<compile_context>
chip_gen: v7x
topology: tpu7x:2x2x1
jax: 0.10.0
libtpu: 0.0.40
codegen_flags: <defaults>
</compile_context>

<pallas_src>
import math

import jax
import jax.numpy as jnp
from jax import lax
from jax.experimental import pallas as pl
from jax.experimental.pallas import tpu as pltpu

_INV_SQRT2 = 1.0 / math.sqrt(2.0)
_LANES = 128
_NEG_BIG = -1e30


def _make_block_kernel(C, E, num_heads, head_dim, L, n_lanes):
    """Forward on one 128-lane slab of positions.

    Channel-major layout: activations are (channels, n_lanes); the lane axis
    holds (n_lanes // L) complete images of L = H*W positions each.
    """
    L_pow2 = (L & (L - 1)) == 0

    def kernel(x_ref, wqkv_ref, bqkv_ref, wcv_ref, bcv_ref, vecs_ref, wr_ref, y_ref):
        s1 = vecs_ref[:, 0:1]          # (C,1) eval-mode BN scale
        t1 = vecs_ref[:, 1:2]          # (C,1) eval-mode BN shift
        br = vecs_ref[:, 2:3]          # (C,1) reshape-conv bias (BN folded)

        x = x_ref[...]                                      # (C, N) f32
        xa = jnp.maximum(x * s1 + t1, 0.0)                  # relu(bn(x))

        # fused 1x1-conv projections (bf16 operands, f32 accumulation):
        #   qkv rows = [wq/temperature | wk | gamma*wv]  applied to relu(bn(x))
        #   conv branch applied to raw x
        qkv = jnp.dot(wqkv_ref[...], xa.astype(jnp.bfloat16),
                      preferred_element_type=jnp.float32) + bqkv_ref[...]   # (3E, N)
        convx = jnp.maximum(
            jnp.dot(wcv_ref[...], x.astype(jnp.bfloat16),
                    preferred_element_type=jnp.float32) + bcv_ref[...],
            0.0)                                                            # (E, N)

        q = qkv[0:E]                  # already scaled by 1/temperature
        k = qkv[E:2 * E]
        v = qkv[2 * E:3 * E]          # already scaled by gamma

        # block-diagonal additive mask: positions attend only within their own
        # image; grid-invariant, hoisted out of the head loop, skipped when one
        # slab is exactly one image.
        if L == n_lanes:
            neg = None
        else:
            row = lax.broadcasted_iota(jnp.int32, (n_lanes, n_lanes), 0)
            col = lax.broadcasted_iota(jnp.int32, (n_lanes, n_lanes), 1)
            same = ((row ^ col) < L) if L_pow2 else ((row // L) == (col // L))
            neg = jnp.where(same, 0.0, _NEG_BIG)                            # (N, N)

        ones_row = jnp.ones((1, n_lanes), jnp.bfloat16)
        head_outs = []
        for h in range(num_heads):
            lo = h * head_dim
            hi = lo + head_dim
            qh = q[lo:hi].astype(jnp.bfloat16)                              # (hd, N)
            kh = k[lo:hi].astype(jnp.bfloat16)
            vh = v[lo:hi].astype(jnp.bfloat16)
            # scores[i, j] = sum_d qh[d, i] * kh[d, j]   (temperature folded)
            s = lax.dot_general(qh, kh, (((0,), (0,)), ((), ())),
                                preferred_element_type=jnp.float32)         # (N, N)
            if neg is not None:
                s = s + neg
            s = s - jnp.max(s, axis=-1, keepdims=True)
            p = jnp.exp(s).astype(jnp.bfloat16)                             # unnormalised
            # num[d, i] = sum_j vh[d, j] * p[i, j] ; den[0, i] = sum_j p[i, j]
            num = lax.dot_general(vh, p, (((1,), (1,)), ((), ())),
                                  preferred_element_type=jnp.float32)       # (hd, N)
            den = lax.dot_general(ones_row, p, (((1,), (1,)), ((), ())),
                                  preferred_element_type=jnp.float32)       # (1, N)
            head_outs.append(num * pl.reciprocal(den, approx=True))

        # gamma*attention (gamma folded into v) + conv branch
        out = jnp.concatenate(head_outs, axis=0) + convx                    # (E, N)

        # self.reshape: 1x1 conv (BN folded) + exact (erf) GELU
        u = jnp.dot(wr_ref[...], out.astype(jnp.bfloat16),
                    preferred_element_type=jnp.float32) + br                # (C, N)
        y_ref[...] = 0.5 * u * (1.0 + lax.erf(u * _INV_SQRT2))

    return kernel


def mhsa_block_apply_cm(x_cm, params, num_heads, L):
    """Channel-major entry: x_cm (C, N=B*H*W) -> (C, N).
    Keep activations in this layout between stacked blocks to avoid per-block
    HBM transposes."""
    C, N = x_cm.shape
    E = params["wr"].shape[1]
    head_dim = E // num_heads

    if N % _LANES != 0 or _LANES % L != 0:
        raise ValueError("demo kernel requires B*H*W % 128 == 0 and 128 % (H*W) == 0")
    n_blocks = N // _LANES

    kernel = _make_block_kernel(C, E, num_heads, head_dim, L, _LANES)

    return pl.pallas_call(
        kernel,
        out_shape=jax.ShapeDtypeStruct((C, N), jnp.float32),
        grid=(n_blocks,),
        in_specs=[
            pl.BlockSpec((C, _LANES), lambda i: (0, i)),        # activation slab (f32)
            pl.BlockSpec((3 * E, C), lambda i: (0, 0)),         # q|k|v weights (bf16, folds applied)
            pl.BlockSpec((3 * E, 1), lambda i: (0, 0)),         # q|k|v biases (f32)
            pl.BlockSpec((E, C), lambda i: (0, 0)),             # conv-branch weight (bf16, BN folded)
            pl.BlockSpec((E, 1), lambda i: (0, 0)),             # conv-branch bias (f32)
            pl.BlockSpec((C, 3), lambda i: (0, 0)),             # packed [s1 | t1 | br] (f32)
            pl.BlockSpec((C, E), lambda i: (0, 0)),             # reshape weight (bf16, BN folded)
        ],
        out_specs=pl.BlockSpec((C, _LANES), lambda i: (0, i)),
        compiler_params=pltpu.CompilerParams(dimension_semantics=("parallel",)),
    )(x_cm, params["w_qkv"], params["b_qkv"], params["w_cv"], params["b_cv"],
      params["vecs"], params["wr"])


def mhsa_block_apply(x_nchw, params, num_heads):
    """NCHW boundary wrapper: (B, C, H, W) f32 -> (B, C, H, W) f32."""
    B, C, H, W = x_nchw.shape
    L = H * W
    x_cm = jnp.transpose(x_nchw, (1, 0, 2, 3)).reshape(C, B * L)
    y_cm = mhsa_block_apply_cm(x_cm, params, num_heads, L)
    return y_cm.reshape(C, B, H, W).transpose(1, 0, 2, 3)


def init_block_params(key, in_channels, embed_dim, num_heads,
                      gamma=0.5, temperature=1.3, eps=1e-5):
    """Deterministic synthetic parameters (eval-mode BN; BN-after-conv folded).
    gamma/temperature set to non-trivial values so the attention path is
    exercised (PyTorch inits gamma to 0). 1/temperature is folded into the Q
    weights and gamma into the V weights (exact linear rescalings).
    Returns (packed_params, ref_params)."""
    # TODO(synk): training-mode BatchNorm (batch-statistics update) has no clean
    # single-kernel equivalent here; eval-mode BN is folded into the 1x1 convs.
    C, E = in_channels, embed_dim
    keys = jax.random.split(key, 13)

    def conv_params(kw, kb, cin, cout):
        bound = 1.0 / math.sqrt(cin)                  # PyTorch Conv2d default init
        w = jax.random.uniform(kw, (cout, cin), jnp.float32, -bound, bound)
        b = jax.random.uniform(kb, (cout, 1), jnp.float32, -bound, bound)
        return w, b

    def bn_affine(k, n):
        k1, k2, k3, k4 = jax.random.split(k, 4)
        w = jax.random.uniform(k1, (n, 1), jnp.float32, 0.5, 1.5)
        b = 0.1 * jax.random.normal(k2, (n, 1), jnp.float32)
        mean = 0.1 * jax.random.normal(k3, (n, 1), jnp.float32)
        var = jax.random.uniform(k4, (n, 1), jnp.float32, 0.5, 1.5)
        s = w / jnp.sqrt(var + eps)
        t = b - mean * s
        return s, t

    wq, bq = conv_params(keys[0], keys[1], C, E)      # self.query
    wk, bk = conv_params(keys[2], keys[3], C, E)      # self.key
    wv, bv = conv_params(keys[4], keys[5], C, E)      # self.value
    wc, bc = conv_params(keys[6], keys[7], C, E)      # self.conv Conv2d
    wr, br = conv_params(keys[8], keys[9], E, C)      # self.reshape Conv2d
    s1, t1 = bn_affine(keys[10], C)                   # self.bn
    sc, tc = bn_affine(keys[11], E)                   # BN inside self.conv
    sr, tr = bn_affine(keys[12], C)                   # BN inside self.reshape

    # fold BN(conv(x)): BN(Wx + b) = (s*W)x + (s*b + t)    (exact in eval mode)
    wc_eff, bc_eff = wc * sc, bc * sc + tc
    wr_eff, br_eff = wr * sr, br * sr + tr

    inv_t = jnp.float32(1.0 / temperature)
    g = jnp.float32(gamma)

    # fused q|k|v projection with 1/temperature and gamma folded in (exact)
    w_qkv = jnp.concatenate([wq * inv_t, wk, wv * g], axis=0)             # (3E, C)
    b_qkv = jnp.concatenate([bq * inv_t, bk, bv * g], axis=0)             # (3E, 1)

    vecs = jnp.concatenate([s1, t1, br_eff], axis=1)                      # (C, 3)

    packed = dict(
        w_qkv=w_qkv.astype(jnp.bfloat16), b_qkv=b_qkv,
        w_cv=wc_eff.astype(jnp.bfloat16), b_cv=bc_eff,
        vecs=vecs, wr=wr_eff.astype(jnp.bfloat16))
    ref = dict(gamma=jnp.float32(gamma), temperature=jnp.float32(temperature),
               s1=s1, t1=t1, wq=wq, bq=bq, wk=wk, bk=bk, wv=wv, bv=bv,
               wc=wc_eff, bc=bc_eff, wr=wr_eff, br=br_eff)
    return packed, ref


def mhsa_block_ref(x_nchw, rp, num_heads):
    """Pure-JAX f32 reference of the PyTorch forward (eval-mode BN folded)."""
    B, C, H, W = x_nchw.shape
    L = H * W
    E = rp["wq"].shape[0]
    hd = E // num_heads

    x = x_nchw.reshape(B, C, L)                                           # (B, C, L)
    xa = jnp.maximum(x * rp["s1"][None] + rp["t1"][None], 0.0)            # bn + relu
    q = jnp.einsum('ec,bcl->bel', rp["wq"], xa) + rp["bq"][None]
    k = jnp.einsum('ec,bcl->bel', rp["wk"], xa) + rp["bk"][None]
    v = jnp.einsum('ec,bcl->bel', rp["wv"], xa) + rp["bv"][None]
    qh = q.reshape(B, num_heads, hd, L)
    kh = k.reshape(B, num_heads, hd, L)
    vh = v.reshape(B, num_heads, hd, L)
    s = jnp.einsum('bhdi,bhdj->bhij', qh, kh) / rp["temperature"]
    s = s - s.max(-1, keepdims=True)
    w = jax.nn.softmax(s, axis=-1)
    o = jnp.einsum('bhij,bhdj->bhdi', w, vh)                              # (B, nh, hd, L)
    attn = o.reshape(B, E, L)
    convx = jnp.maximum(jnp.einsum('ec,bcl->bel', rp["wc"], x) + rp["bc"][None], 0.0)
    out = rp["gamma"] * attn + convx
    u = jnp.einsum('ce,bel->bcl', rp["wr"], out) + rp["br"][None]
    g = 0.5 * u * (1.0 + lax.erf(u * _INV_SQRT2))
    return g.reshape(B, C, H, W)


if __name__ == "__main__":
    in_channels, embed_dim, num_heads = 4, 32, 4
    B, H, W = 4, 8, 8      # B*H*W = 256 -> 2 lane slabs -> real "parallel" grid axis

    key = jax.random.PRNGKey(0)
    kx, kp = jax.random.split(key)
    x_nchw = jax.random.normal(kx, (B, in_channels, H, W), jnp.float32)
    packed, ref_params = init_block_params(kp, in_channels, embed_dim, num_heads)

    # Pallas kernel
    y = jax.block_until_ready(mhsa_block_apply(x_nchw, packed, num_heads))

    # pure-JAX f32 reference check (kernel uses bf16 MXU operands -> looser tol)
    y_ref = mhsa_block_ref(x_nchw, ref_params, num_heads)
    assert y.shape == (B, in_channels, H, W)
    assert jnp.allclose(y, y_ref, atol=3e-2, rtol=3e-2), "mismatch vs reference"
    print("KERNEL_OK")
</pallas_src>

<mosaic_0001>
module attributes {stable_mosaic.version = 11 : i64} {
  func.func @kernel(%arg0: i32, %arg1: memref<4x128xf32, #tpu.memory_space<vmem>>, %arg2: memref<96x4xbf16, #tpu.memory_space<vmem>>, %arg3: memref<96x1xf32, #tpu.memory_space<vmem>>, %arg4: memref<32x4xbf16, #tpu.memory_space<vmem>>, %arg5: memref<32x1xf32, #tpu.memory_space<vmem>>, %arg6: memref<4x3xf32, #tpu.memory_space<vmem>>, %arg7: memref<4x32xbf16, #tpu.memory_space<vmem>>, %arg8: memref<4x128xf32, #tpu.memory_space<vmem>>) attributes {dimension_semantics = [#tpu.dimension_semantics<parallel>], iteration_bounds = array<i64: 2>, scalar_prefetch = 0 : i64, scratch_operands = 0 : i64, tpu.core_type = #tpu.core_type<tc>, window_params = [{transform_indices = @transform_0, window_bounds = array<i64: 4, 128>}, {pipeline_mode = #tpu.pipeline_mode<synchronous>, transform_indices = @transform_1, window_bounds = array<i64: 96, 4>}, {pipeline_mode = #tpu.pipeline_mode<synchronous>, transform_indices = @transform_2, window_bounds = array<i64: 96, 1>}, {pipeline_mode = #tpu.pipeline_mode<synchronous>, transform_indices = @transform_3, window_bounds = array<i64: 32, 4>}, {pipeline_mode = #tpu.pipeline_mode<synchronous>, transform_indices = @transform_4, window_bounds = array<i64: 32, 1>}, {pipeline_mode = #tpu.pipeline_mode<synchronous>, transform_indices = @transform_5, window_bounds = array<i64: 4, 3>}, {pipeline_mode = #tpu.pipeline_mode<synchronous>, transform_indices = @transform_6, window_bounds = array<i64: 4, 32>}, {transform_indices = @transform_7, window_bounds = array<i64: 4, 128>}]} {
    %c0 = arith.constant 0 : index
    %c0_0 = arith.constant 0 : index
    %0 = vector.load %arg6[%c0, %c0_0] : memref<4x3xf32, #tpu.memory_space<vmem>>, vector<4x1xf32>
    %c0_1 = arith.constant 0 : index
    %c1 = arith.constant 1 : index
    %1 = vector.load %arg6[%c0_1, %c1] : memref<4x3xf32, #tpu.memory_space<vmem>>, vector<4x1xf32>
    %c0_2 = arith.constant 0 : index
    %c2 = arith.constant 2 : index
    %2 = vector.load %arg6[%c0_2, %c2] : memref<4x3xf32, #tpu.memory_space<vmem>>, vector<4x1xf32>
    %c0_3 = arith.constant 0 : index
    %c0_4 = arith.constant 0 : index
    %3 = vector.load %arg1[%c0_3, %c0_4] : memref<4x128xf32, #tpu.memory_space<vmem>>, vector<4x128xf32>
    %4 = vector.broadcast %0 : vector<4x1xf32> to vector<4x128xf32>
    %5 = arith.mulf %3, %4 : vector<4x128xf32>
    %6 = vector.broadcast %1 : vector<4x1xf32> to vector<4x128xf32>
    %7 = arith.addf %5, %6 : vector<4x128xf32>
    %cst = arith.constant 0.000000e+00 : f32
    %8 = vector.broadcast %cst : f32 to vector<4x128xf32>
    %9 = arith.maximumf %7, %8 : vector<4x128xf32>
    %c0_5 = arith.constant 0 : index
    %c0_6 = arith.constant 0 : index
    %10 = vector.load %arg2[%c0_5, %c0_6] : memref<96x4xbf16, #tpu.memory_space<vmem>>, vector<96x4xbf16>
    %11 = arith.truncf %9 : vector<4x128xf32> to vector<4x128xbf16>
    %cst_7 = arith.constant dense<0.000000e+00> : vector<96x128xf32>
    %12 = tpu.matmul %10, %11, %cst_7 {dimension_numbers = #tpu.dot_dimension_numbers<[1], [0], [0], [1], [0, 0, 1, 1], [], []>} : vector<96x4xbf16>, vector<4x128xbf16>, vector<96x128xf32> -> vector<96x128xf32>
    %c0_8 = arith.constant 0 : index
    %c0_9 = arith.constant 0 : index
    %13 = vector.load %arg3[%c0_8, %c0_9] : memref<96x1xf32, #tpu.memory_space<vmem>>, vector<96x1xf32>
    %14 = vector.broadcast %13 : vector<96x1xf32> to vector<96x128xf32>
    %15 = arith.addf %12, %14 : vector<96x128xf32>
    %c0_10 = arith.constant 0 : index
    %c0_11 = arith.constant 0 : index
    %16 = vector.load %arg4[%c0_10, %c0_11] : memref<32x4xbf16, #tpu.memory_space<vmem>>, vector<32x4xbf16>
    %17 = arith.truncf %3 : vector<4x128xf32> to vector<4x128xbf16>
    %cst_12 = arith.constant dense<0.000000e+00> : vector<32x128xf32>
    %18 = tpu.matmul %16, %17, %cst_12 {dimension_numbers = #tpu.dot_dimension_numbers<[1], [0], [0], [1], [0, 0, 1, 1], [], []>} : vector<32x4xbf16>, vector<4x128xbf16>, vector<32x128xf32> -> vector<32x128xf32>
    %c0_13 = arith.constant 0 : index
    %c0_14 = arith.constant 0 : index
    %19 = vector.load %arg5[%c0_13, %c0_14] : memref<32x1xf32, #tpu.memory_space<vmem>>, vector<32x1xf32>
    %20 = vector.broadcast %19 : vector<32x1xf32> to vector<32x128xf32>
    %21 = arith.addf %18, %20 : vector<32x128xf32>
    %cst_15 = arith.constant 0.000000e+00 : f32
    %22 = vector.broadcast %cst_15 : f32 to vector<32x128xf32>
    %23 = arith.maximumf %21, %22 : vector<32x128xf32>
    %24 = vector.extract_strided_slice %15 {offsets = [0, 0], sizes = [32, 128], strides = [1, 1]} : vector<96x128xf32> to vector<32x128xf32>
    %25 = vector.extract_strided_slice %15 {offsets = [32, 0], sizes = [32, 128], strides = [1, 1]} : vector<96x128xf32> to vector<32x128xf32>
    %26 = vector.extract_strided_slice %15 {offsets = [64, 0], sizes = [32, 128], strides = [1, 1]} : vector<96x128xf32> to vector<32x128xf32>
    %27 = tpu.iota {dimensions = array<i32: 0>} : vector<128x128xi32>
    %28 = tpu.iota {dimensions = array<i32: 1>} : vector<128x128xi32>
    %29 = arith.xori %27, %28 : vector<128x128xi32>
    %c64_i32 = arith.constant 64 : i32
    %30 = vector.broadcast %c64_i32 : i32 to vector<128x128xi32>
    %31 = arith.cmpi slt, %29, %30 : vector<128x128xi32>
    %cst_16 = arith.constant 0.000000e+00 : f32
    %cst_17 = arith.constant -1.000000e+30 : f32
    %32 = vector.broadcast %cst_16 : f32 to vector<128x128xf32>
    %33 = vector.broadcast %cst_17 : f32 to vector<128x128xf32>
    %34 = arith.select %31, %32, %33 : vector<128x128xi1>, vector<128x128xf32>
    %cst_18 = arith.constant 1.000000e+00 : bf16
    %35 = vector.broadcast %cst_18 : bf16 to vector<1x128xbf16>
    %36 = vector.extract_strided_slice %24 {offsets = [0, 0], sizes = [8, 128], strides = [1, 1]} : vector<32x128xf32> to vector<8x128xf32>
    %37 = arith.truncf %36 : vector<8x128xf32> to vector<8x128xbf16>
    %38 = vector.extract_strided_slice %25 {offsets = [0, 0], sizes = [8, 128], strides = [1, 1]} : vector<32x128xf32> to vector<8x128xf32>
    %39 = arith.truncf %38 : vector<8x128xf32> to vector<8x128xbf16>
    %40 = vector.extract_strided_slice %26 {offsets = [0, 0], sizes = [8, 128], strides = [1, 1]} : vector<32x128xf32> to vector<8x128xf32>
    %41 = arith.truncf %40 : vector<8x128xf32> to vector<8x128xbf16>
    %cst_19 = arith.constant dense<0.000000e+00> : vector<128x128xf32>
    %42 = tpu.matmul %37, %39, %cst_19 {dimension_numbers = #tpu.dot_dimension_numbers<[0], [0], [1], [1], [0, 1, 1, 1], [], []>} : vector<8x128xbf16>, vector<8x128xbf16>, vector<128x128xf32> -> vector<128x128xf32>
    %43 = arith.addf %42, %34 : vector<128x128xf32>
    %cst_20 = arith.constant dense<0xFF800000> : vector<128xf32>
    %44 = vector.multi_reduction <maximumf>, %43, %cst_20 [1] : vector<128x128xf32> to vector<128xf32>
    %45 = vector.shape_cast %44 : vector<128xf32> to vector<128x1xf32>
    %46 = vector.broadcast %45 : vector<128x1xf32> to vector<128x128xf32>
    %47 = arith.subf %43, %46 : vector<128x128xf32>
    %48 = math.exp %47 : vector<128x128xf32>
    %49 = arith.truncf %48 : vector<128x128xf32> to vector<128x128xbf16>
    %cst_21 = arith.constant dense<0.000000e+00> : vector<8x128xf32>
    %50 = tpu.matmul %41, %49, %cst_21 {dimension_numbers = #tpu.dot_dimension_numbers<[1], [1], [0], [0], [0, 0, 1, 0], [], []>} : vector<8x128xbf16>, vector<128x128xbf16>, vector<8x128xf32> -> vector<8x128xf32>
    %cst_22 = arith.constant dense<0.000000e+00> : vector<1x128xf32>
    %51 = tpu.matmul %35, %49, %cst_22 {dimension_numbers = #tpu.dot_dimension_numbers<[1], [1], [0], [0], [0, 0, 1, 0], [], []>} : vector<1x128xbf16>, vector<128x128xbf16>, vector<1x128xf32> -> vector<1x128xf32>
    %52 = tpu.reciprocal %51 {approx = true} : vector<1x128xf32> -> vector<1x128xf32>
    %53 = vector.broadcast %52 : vector<1x128xf32> to vector<8x128xf32>
    %54 = arith.mulf %50, %53 : vector<8x128xf32>
    %55 = vector.extract_strided_slice %24 {offsets = [8, 0], sizes = [8, 128], strides = [1, 1]} : vector<32x128xf32> to vector<8x128xf32>
    %56 = arith.truncf %55 : vector<8x128xf32> to vector<8x128xbf16>
    %57 = vector.extract_strided_slice %25 {offsets = [8, 0], sizes = [8, 128], strides = [1, 1]} : vector<32x128xf32> to vector<8x128xf32>
    %58 = arith.truncf %57 : vector<8x128xf32> to vector<8x128xbf16>
    %59 = vector.extract_strided_slice %26 {offsets = [8, 0], sizes = [8, 128], strides = [1, 1]} : vector<32x128xf32> to vector<8x128xf32>
    %60 = arith.truncf %59 : vector<8x128xf32> to vector<8x128xbf16>
    %cst_23 = arith.constant dense<0.000000e+00> : vector<128x128xf32>
    %61 = tpu.matmul %56, %58, %cst_23 {dimension_numbers = #tpu.dot_dimension_numbers<[0], [0], [1], [1], [0, 1, 1, 1], [], []>} : vector<8x128xbf16>, vector<8x128xbf16>, vector<128x128xf32> -> vector<128x128xf32>
    %62 = arith.addf %61, %34 : vector<128x128xf32>
    %cst_24 = arith.constant dense<0xFF800000> : vector<128xf32>
    %63 = vector.multi_reduction <maximumf>, %62, %cst_24 [1] : vector<128x128xf32> to vector<128xf32>
    %64 = vector.shape_cast %63 : vector<128xf32> to vector<128x1xf32>
    %65 = vector.broadcast %64 : vector<128x1xf32> to vector<128x128xf32>
    %66 = arith.subf %62, %65 : vector<128x128xf32>
    %67 = math.exp %66 : vector<128x128xf32>
    %68 = arith.truncf %67 : vector<128x128xf32> to vector<128x128xbf16>
    %cst_25 = arith.constant dense<0.000000e+00> : vector<8x128xf32>
    %69 = tpu.matmul %60, %68, %cst_25 {dimension_numbers = #tpu.dot_dimension_numbers<[1], [1], [0], [0], [0, 0, 1, 0], [], []>} : vector<8x128xbf16>, vector<128x128xbf16>, vector<8x128xf32> -> vector<8x128xf32>
    %cst_26 = arith.constant dense<0.000000e+00> : vector<1x128xf32>
    %70 = tpu.matmul %35, %68, %cst_26 {dimension_numbers = #tpu.dot_dimension_numbers<[1], [1], [0], [0], [0, 0, 1, 0], [], []>} : vector<1x128xbf16>, vector<128x128xbf16>, vector<1x128xf32> -> vector<1x128xf32>
    %71 = tpu.reciprocal %70 {approx = true} : vector<1x128xf32> -> vector<1x128xf32>
    %72 = vector.broadcast %71 : vector<1x128xf32> to vector<8x128xf32>
    %73 = arith.mulf %69, %72 : vector<8x128xf32>
    %74 = vector.extract_strided_slice %24 {offsets = [16, 0], sizes = [8, 128], strides = [1, 1]} : vector<32x128xf32> to vector<8x128xf32>
    %75 = arith.truncf %74 : vector<8x128xf32> to vector<8x128xbf16>
    %76 = vector.extract_strided_slice %25 {offsets = [16, 0], sizes = [8, 128], strides = [1, 1]} : vector<32x128xf32> to vector<8x128xf32>
    %77 = arith.truncf %76 : vector<8x128xf32> to vector<8x128xbf16>
    %78 = vector.extract_strided_slice %26 {offsets = [16, 0], sizes = [8, 128], strides = [1, 1]} : vector<32x128xf32> to vector<8x128xf32>
    %79 = arith.truncf %78 : vector<8x128xf32> to vector<8x128xbf16>
    %cst_27 = arith.constant dense<0.000000e+00> : vector<128x128xf32>
    %80 = tpu.matmul %75, %77, %cst_27 {dimension_numbers = #tpu.dot_dimension_numbers<[0], [0], [1], [1], [0, 1, 1, 1], [], []>} : vector<8x128xbf16>, vector<8x128xbf16>, vector<128x128xf32> -> vector<128x128xf32>
    %81 = arith.addf %80, %34 : vector<128x128xf32>
    %cst_28 = arith.constant dense<0xFF800000> : vector<128xf32>
    %82 = vector.multi_reduction <maximumf>, %81, %cst_28 [1] : vector<128x128xf32> to vector<128xf32>
    %83 = vector.shape_cast %82 : vector<128xf32> to vector<128x1xf32>
    %84 = vector.broadcast %83 : vector<128x1xf32> to vector<128x128xf32>
    %85 = arith.subf %81, %84 : vector<128x128xf32>
    %86 = math.exp %85 : vector<128x128xf32>
    %87 = arith.truncf %86 : vector<128x128xf32> to vector<128x128xbf16>
    %cst_29 = arith.constant dense<0.000000e+00> : vector<8x128xf32>
    %88 = tpu.matmul %79, %87, %cst_29 {dimension_numbers = #tpu.dot_dimension_numbers<[1], [1], [0], [0], [0, 0, 1, 0], [], []>} : vector<8x128xbf16>, vector<128x128xbf16>, vector<8x128xf32> -> vector<8x128xf32>
    %cst_30 = arith.constant dense<0.000000e+00> : vector<1x128xf32>
    %89 = tpu.matmul %35, %87, %cst_30 {dimension_numbers = #tpu.dot_dimension_numbers<[1], [1], [0], [0], [0, 0, 1, 0], [], []>} : vector<1x128xbf16>, vector<128x128xbf16>, vector<1x128xf32> -> vector<1x128xf32>
    %90 = tpu.reciprocal %89 {approx = true} : vector<1x128xf32> -> vector<1x128xf32>
    %91 = vector.broadcast %90 : vector<1x128xf32> to vector<8x128xf32>
    %92 = arith.mulf %88, %91 : vector<8x128xf32>
    %93 = vector.extract_strided_slice %24 {offsets = [24, 0], sizes = [8, 128], strides = [1, 1]} : vector<32x128xf32> to vector<8x128xf32>
    %94 = arith.truncf %93 : vector<8x128xf32> to vector<8x128xbf16>
    %95 = vector.extract_strided_slice %25 {offsets = [24, 0], sizes = [8, 128], strides = [1, 1]} : vector<32x128xf32> to vector<8x128xf32>
    %96 = arith.truncf %95 : vector<8x128xf32> to vector<8x128xbf16>
    %97 = vector.extract_strided_slice %26 {offsets = [24, 0], sizes = [8, 128], strides = [1, 1]} : vector<32x128xf32> to vector<8x128xf32>
    %98 = arith.truncf %97 : vector<8x128xf32> to vector<8x128xbf16>
    %cst_31 = arith.constant dense<0.000000e+00> : vector<128x128xf32>
    %99 = tpu.matmul %94, %96, %cst_31 {dimension_numbers = #tpu.dot_dimension_numbers<[0], [0], [1], [1], [0, 1, 1, 1], [], []>} : vector<8x128xbf16>, vector<8x128xbf16>, vector<128x128xf32> -> vector<128x128xf32>
    %100 = arith.addf %99, %34 : vector<128x128xf32>
    %cst_32 = arith.constant dense<0xFF800000> : vector<128xf32>
    %101 = vector.multi_reduction <maximumf>, %100, %cst_32 [1] : vector<128x128xf32> to vector<128xf32>
    %102 = vector.shape_cast %101 : vector<128xf32> to vector<128x1xf32>
    %103 = vector.broadcast %102 : vector<128x1xf32> to vector<128x128xf32>
    %104 = arith.subf %100, %103 : vector<128x128xf32>
    %105 = math.exp %104 : vector<128x128xf32>
    %106 = arith.truncf %105 : vector<128x128xf32> to vector<128x128xbf16>
    %cst_33 = arith.constant dense<0.000000e+00> : vector<8x128xf32>
    %107 = tpu.matmul %98, %106, %cst_33 {dimension_numbers = #tpu.dot_dimension_numbers<[1], [1], [0], [0], [0, 0, 1, 0], [], []>} : vector<8x128xbf16>, vector<128x128xbf16>, vector<8x128xf32> -> vector<8x128xf32>
    %cst_34 = arith.constant dense<0.000000e+00> : vector<1x128xf32>
    %108 = tpu.matmul %35, %106, %cst_34 {dimension_numbers = #tpu.dot_dimension_numbers<[1], [1], [0], [0], [0, 0, 1, 0], [], []>} : vector<1x128xbf16>, vector<128x128xbf16>, vector<1x128xf32> -> vector<1x128xf32>
    %109 = tpu.reciprocal %108 {approx = true} : vector<1x128xf32> -> vector<1x128xf32>
    %110 = vector.broadcast %109 : vector<1x128xf32> to vector<8x128xf32>
    %111 = arith.mulf %107, %110 : vector<8x128xf32>
    %112 = tpu.concatenate %54, %73, %92, %111 in 0 : vector<8x128xf32>, vector<8x128xf32>, vector<8x128xf32>, vector<8x128xf32> -> vector<32x128xf32>
    %113 = arith.addf %112, %23 : vector<32x128xf32>
    %c0_35 = arith.constant 0 : index
    %c0_36 = arith.constant 0 : index
    %114 = vector.load %arg7[%c0_35, %c0_36] : memref<4x32xbf16, #tpu.memory_space<vmem>>, vector<4x32xbf16>
    %115 = arith.truncf %113 : vector<32x128xf32> to vector<32x128xbf16>
    %cst_37 = arith.constant dense<0.000000e+00> : vector<4x128xf32>
    %116 = tpu.matmul %114, %115, %cst_37 {dimension_numbers = #tpu.dot_dimension_numbers<[1], [0], [0], [1], [0, 0, 1, 1], [], []>} : vector<4x32xbf16>, vector<32x128xbf16>, vector<4x128xf32> -> vector<4x128xf32>
    %117 = vector.broadcast %2 : vector<4x1xf32> to vector<4x128xf32>
    %118 = arith.addf %116, %117 : vector<4x128xf32>
    %cst_38 = arith.constant 5.000000e-01 : f32
    %119 = vector.broadcast %cst_38 : f32 to vector<4x128xf32>
    %120 = arith.mulf %119, %118 : vector<4x128xf32>
    %cst_39 = arith.constant 0.707106769 : f32
    %121 = vector.broadcast %cst_39 : f32 to vector<4x128xf32>
    %122 = arith.mulf %118, %121 : vector<4x128xf32>
    %123 = math.erf %122 : vector<4x128xf32>
    %cst_40 = arith.constant 1.000000e+00 : f32
    %124 = vector.broadcast %cst_40 : f32 to vector<4x128xf32>
    %125 = arith.addf %124, %123 : vector<4x128xf32>
    %126 = arith.mulf %120, %125 : vector<4x128xf32>
    %c0_41 = arith.constant 0 : index
    %c0_42 = arith.constant 0 : index
    %127 = vector.load %arg8[%c0_41, %c0_42] : memref<4x128xf32, #tpu.memory_space<vmem>>, vector<4x128xf32>
    tpu.vector_store %arg8[%c0_41, %c0_42], %126 {strides = array<i32>} : memref<4x128xf32, #tpu.memory_space<vmem>>, vector<4x128xf32>,
    return
  }
  func.func @transform_0(%arg0: i32) -> (i32, i32) {
    %c0_i32 = arith.constant 0 : i32
    %c0_i32_0 = arith.constant 0 : i32
    return %c0_i32, %arg0 : i32, i32
  }
  func.func @transform_1(%arg0: i32) -> (i32, i32) {
    %c0_i32 = arith.constant 0 : i32
    %c0_i32_0 = arith.constant 0 : i32
    %c0_i32_1 = arith.constant 0 : i32
    return %c0_i32, %c0_i32_0 : i32, i32
  }
  func.func @transform_2(%arg0: i32) -> (i32, i32) {
    %c0_i32 = arith.constant 0 : i32
    %c0_i32_0 = arith.constant 0 : i32
    %c0_i32_1 = arith.constant 0 : i32
    return %c0_i32, %c0_i32_0 : i32, i32
  }
  func.func @transform_3(%arg0: i32) -> (i32, i32) {
    %c0_i32 = arith.constant 0 : i32
    %c0_i32_0 = arith.constant 0 : i32
    %c0_i32_1 = arith.constant 0 : i32
    return %c0_i32, %c0_i32_0 : i32, i32
  }
  func.func @transform_4(%arg0: i32) -> (i32, i32) {
    %c0_i32 = arith.constant 0 : i32
    %c0_i32_0 = arith.constant 0 : i32
    %c0_i32_1 = arith.constant 0 : i32
    return %c0_i32, %c0_i32_0 : i32, i32
  }
  func.func @transform_5(%arg0: i32) -> (i32, i32) {
    %c0_i32 = arith.constant 0 : i32
    %c0_i32_0 = arith.constant 0 : i32
    %c0_i32_1 = arith.constant 0 : i32
    return %c0_i32, %c0_i32_0 : i32, i32
  }
  func.func @transform_6(%arg0: i32) -> (i32, i32) {
    %c0_i32 = arith.constant 0 : i32
    %c0_i32_0 = arith.constant 0 : i32
    %c0_i32_1 = arith.constant 0 : i32
    return %c0_i32, %c0_i32_0 : i32, i32
  }
  func.func @transform_7(%arg0: i32) -> (i32, i32) {
    %c0_i32 = arith.constant 0 : i32
    %c0_i32_0 = arith.constant 0 : i32
    return %c0_i32, %arg0 : i32, i32
  }
}

</mosaic_0001>

<llo_original>
// kernel: tpu_custom_call.1
$region0: #{tpu_custom_call.1}
  #allocation0 [shape = 'u32[]', space=smem, size = 0x4, offset = 0x4, fixed_abs, tag = 'smem constant byte address 0x4 - core index']
  #allocation1 [shape = 'u32[144,128]{1,0:T(1,128)}', space=vmem, size = 0x12000, scoped, tag = 'internal scratch']
  %s0 = inlined_call_operand.vmem [shape: f32[4,256], index: 0, kind: input, shape index: {}]
  %s1 = inlined_call_operand.vmem [shape: bf16[96,4], index: 1, kind: input, shape index: {}]
  %s2 = inlined_call_operand.vmem [shape: f32[96,1], index: 2, kind: input, shape index: {}]
  %s3 = inlined_call_operand.vmem [shape: bf16[32,4], index: 3, kind: input, shape index: {}]
  %s4 = inlined_call_operand.vmem [shape: f32[32,1], index: 4, kind: input, shape index: {}]
  %s5 = inlined_call_operand.vmem [shape: f32[4,3], index: 5, kind: input, shape index: {}]
  %s6 = inlined_call_operand.vmem [shape: bf16[4,32], index: 6, kind: input, shape index: {}]
  %s7 = inlined_call_operand.hbm [shape: f32[4,256], index: 7, kind: output, shape index: {}]
  %s8 = sld [smem:[#allocation0]]
  $region61: #{tpu_custom_call.1} parent=0
    _
  %s10 = ssub.s32 1, %s8
  %s11 = scalar_select 0, %s10, %s8
  $region1: #{tpu_custom_call.1} parent=0
    #allocation2 [shape = 'u8[4096]{0}', space=vmem, size = 0x1000, scoped, tag = 'output window, operand 0']
    #allocation3 [shape = 's32[2]{0}', space=sflag, size = 0x8, scoped, tag = 'scoped memory for tpu_custom_call.1']
    %12 = vsyncpa [#allocation3], 0
    %s13 = scalar_lea.sflag [#allocation3], 1
    %14 = vsyncpa %s13, 0
    loop: start=0, step=1, limit=4
    $region2: #{tpu_custom_call.1} parent=1 // loop_pre_header
      _
    $region3: #{tpu_custom_call.1} parent=1 // loop_header
      %s16 = sphi 0, %s20
      %p17 = scmp.ge.s32.totalorder %s16, 4
      %s26 = sphi 0, %s28
      %s29 = sphi 0, %s26
      %s30 = sphi 0, %s29
      %s46 = sphi 0, %s30
      %s50 = sphi 0, %s50
      %s52 = sphi 0, %s50
      %s53 = sphi 0, %s52
      %s67 = sphi 0, %s53
      %s71 = sphi 0, %s71
      %s73 = sphi 0, %s71
      %s74 = sphi 0, %s73
      %s88 = sphi 0, %s74
      %s92 = sphi 0, %s92
      %s94 = sphi 0, %s92
      %s95 = sphi 0, %s94
      %s109 = sphi 0, %s95
      %s113 = sphi 0, %s113
      %s115 = sphi 0, %s113
      %s116 = sphi 0, %s115
      %s130 = sphi 0, %s116
      %s134 = sphi 0, %s134
      %s136 = sphi 0, %s134
      %s137 = sphi 0, %s136
      %s151 = sphi 0, %s137
      %s155 = sphi 0, %s155
      %s157 = sphi 0, %s155
      %s158 = sphi 0, %s157
      %s172 = sphi 0, %s158
      %s178 = sphi 0, %s180
      %s181 = sphi 0, %s178
      %s182 = sphi 0, %s181
      %s198 = sphi 0, %s182
    $region4: #{tpu_custom_call.1} parent=1 // loop_header_branch
      %19 = sbr.rel (%p17) target = $region8
    $region5: #{tpu_custom_call.1} parent=1 // loop_body
      %s21 = ssub.s32 %s16, 1
      %s22 = ssub.s32 %s16, 2
      %s23 = sadd.s32 %s16, 1
      %s24 = ssub.s32 %s16, %s23
      %p25 = scmp.eq.s32.totalorder %s24, 0
      %s27 = sadd.s32 %s26, 1
      %s28 = scalar_select %p25, %s26, %s27
      %p31 = pneg %p25
      %p32 = scmp.eq.s32.totalorder %s16, 1
      %p33 = por %p31, %p32
      %p34 = scmp.ne.s32.totalorder %s26, %s29
      %p35 = scmp.eq.s32.totalorder %s16, 0
      %p36 = por %p34, %p35
      %p37 = scmp.ne.s32.totalorder %s26, %s29
      %p38 = scmp.eq.s32.totalorder %s21, 1
      %p39 = por %p37, %p38
      %p40 = scmp.ne.s32.totalorder %s29, %s30
      %p41 = scmp.eq.s32.totalorder %s21, 0
      %p42 = por %p40, %p41
      %p43 = scmp.ne.s32.totalorder %s29, %s30
      %p44 = scmp.eq.s32.totalorder %s22, 1
      %p45 = por %p43, %p44
      %p47 = scmp.ne.s32.totalorder %s30, %s46
      %p48 = scmp.eq.s32.totalorder %s22, 0
      %p49 = por %p47, %p48
      %s51 = sadd.s32 %s50, 1
      %p54 = scmp.eq.s32.totalorder %s16, 1
      %p55 = scmp.ne.s32.totalorder %s50, %s52
      %p56 = scmp.eq.s32.totalorder %s16, 0
      %p57 = por %p55, %p56
      %p58 = scmp.ne.s32.totalorder %s50, %s52
      %p59 = scmp.eq.s32.totalorder %s21, 1
      %p60 = por %p58, %p59
      %p61 = scmp.ne.s32.totalorder %s52, %s53
      %p62 = scmp.eq.s32.totalorder %s21, 0
      %p63 = por %p61, %p62
      %p64 = scmp.ne.s32.totalorder %s52, %s53
      %p65 = scmp.eq.s32.totalorder %s22, 1
      %p66 = por %p64, %p65
      %p68 = scmp.ne.s32.totalorder %s53, %s67
      %p69 = scmp.eq.s32.totalorder %s22, 0
      %p70 = por %p68, %p69
      %s72 = sadd.s32 %s71, 1
      %p75 = scmp.eq.s32.totalorder %s16, 1
      %p76 = scmp.ne.s32.totalorder %s71, %s73
      %p77 = scmp.eq.s32.totalorder %s16, 0
      %p78 = por %p76, %p77
      %p79 = scmp.ne.s32.totalorder %s71, %s73
      %p80 = scmp.eq.s32.totalorder %s21, 1
      %p81 = por %p79, %p80
      %p82 = scmp.ne.s32.totalorder %s73, %s74
      %p83 = scmp.eq.s32.totalorder %s21, 0
      %p84 = por %p82, %p83
      %p85 = scmp.ne.s32.totalorder %s73, %s74
      %p86 = scmp.eq.s32.totalorder %s22, 1
      %p87 = por %p85, %p86
      %p89 = scmp.ne.s32.totalorder %s74, %s88
      %p90 = scmp.eq.s32.totalorder %s22, 0
      %p91 = por %p89, %p90
      %s93 = sadd.s32 %s92, 1
      %p96 = scmp.eq.s32.totalorder %s16, 1
      %p97 = scmp.ne.s32.totalorder %s92, %s94
      %p98 = scmp.eq.s32.totalorder %s16, 0
      %p99 = por %p97, %p98
      %p100 = scmp.ne.s32.totalorder %s92, %s94
      %p101 = scmp.eq.s32.totalorder %s21, 1
      %p102 = por %p100, %p101
      %p103 = scmp.ne.s32.totalorder %s94, %s95
      %p104 = scmp.eq.s32.totalorder %s21, 0
      %p105 = por %p103, %p104
      %p106 = scmp.ne.s32.totalorder %s94, %s95
      %p107 = scmp.eq.s32.totalorder %s22, 1
      %p108 = por %p106, %p107
      %p110 = scmp.ne.s32.totalorder %s95, %s109
      %p111 = scmp.eq.s32.totalorder %s22, 0
      %p112 = por %p110, %p111
      %s114 = sadd.s32 %s113, 1
      %p117 = scmp.eq.s32.totalorder %s16, 1
      %p118 = scmp.ne.s32.totalorder %s113, %s115
      %p119 = scmp.eq.s32.totalorder %s16, 0
      %p120 = por %p118, %p119
      %p121 = scmp.ne.s32.totalorder %s113, %s115
      %p122 = scmp.eq.s32.totalorder %s21, 1
      %p123 = por %p121, %p122
      %p124 = scmp.ne.s32.totalorder %s115, %s116
      %p125 = scmp.eq.s32.totalorder %s21, 0
      %p126 = por %p124, %p125
      %p127 = scmp.ne.s32.totalorder %s115, %s116
      %p128 = scmp.eq.s32.totalorder %s22, 1
      %p129 = por %p127, %p128
      %p131 = scmp.ne.s32.totalorder %s116, %s130
      %p132 = scmp.eq.s32.totalorder %s22, 0
      %p133 = por %p131, %p132
      %s135 = sadd.s32 %s134, 1
      %p138 = scmp.eq.s32.totalorder %s16, 1
      %p139 = scmp.ne.s32.totalorder %s134, %s136
      %p140 = scmp.eq.s32.totalorder %s16, 0
      %p141 = por %p139, %p140
      %p142 = scmp.ne.s32.totalorder %s134, %s136
      %p143 = scmp.eq.s32.totalorder %s21, 1
      %p144 = por %p142, %p143
      %p145 = scmp.ne.s32.totalorder %s136, %s137
      %p146 = scmp.eq.s32.totalorder %s21, 0
      %p147 = por %p145, %p146
      %p148 = scmp.ne.s32.totalorder %s136, %s137
      %p149 = scmp.eq.s32.totalorder %s22, 1
      %p150 = por %p148, %p149
      %p152 = scmp.ne.s32.totalorder %s137, %s151
      %p153 = scmp.eq.s32.totalorder %s22, 0
      %p154 = por %p152, %p153
      %s156 = sadd.s32 %s155, 1
      %p159 = scmp.eq.s32.totalorder %s16, 1
      %p160 = scmp.ne.s32.totalorder %s155, %s157
      %p161 = scmp.eq.s32.totalorder %s16, 0
      %p162 = por %p160, %p161
      %p163 = scmp.ne.s32.totalorder %s155, %s157
      %p164 = scmp.eq.s32.totalorder %s21, 1
      %p165 = por %p163, %p164
      %p166 = scmp.ne.s32.totalorder %s157, %s158
      %p167 = scmp.eq.s32.totalorder %s21, 0
      %p168 = por %p166, %p167
      %p169 = scmp.ne.s32.totalorder %s157, %s158
      %p170 = scmp.eq.s32.totalorder %s22, 1
      %p171 = por %p169, %p170
      %p173 = scmp.ne.s32.totalorder %s158, %s172
      %p174 = scmp.eq.s32.totalorder %s22, 0
      %p175 = por %p173, %p174
      %s176 = ssub.s32 %s16, %s23
      %p177 = scmp.eq.s32.totalorder %s176, 0
      %s179 = sadd.s32 %s178, 1
      %s180 = scalar_select %p177, %s178, %s179
      %p183 = pneg %p177
      %p184 = scmp.eq.s32.totalorder %s16, 1
      %p185 = por %p183, %p184
      %p186 = scmp.ne.s32.totalorder %s178, %s181
      %p187 = scmp.eq.s32.totalorder %s16, 0
      %p188 = por %p186, %p187
      %p189 = scmp.ne.s32.totalorder %s178, %s181
      %p190 = scmp.eq.s32.totalorder %s21, 1
      %p191 = por %p189, %p190
      %p192 = scmp.ne.s32.totalorder %s181, %s182
      %p193 = scmp.eq.s32.totalorder %s21, 0
      %p194 = por %p192, %p193
      %p195 = scmp.ne.s32.totalorder %s181, %s182
      %p196 = scmp.eq.s32.totalorder %s22, 1
      %p197 = por %p195, %p196
      %p199 = scmp.ne.s32.totalorder %s182, %s198
      %p200 = scmp.eq.s32.totalorder %s22, 0
      %p201 = por %p199, %p200
      %p202 = scmp.le.s32.totalorder 1, %s16
      %p203 = scmp.lt.s32.totalorder %s16, 3
      %p204 = pnand %p202, %p203
      %p205 = pneg %p204
      // Predicated region
      $region9: #{tpu_custom_call.1} parent=5 // pred_check
        _
      $region10: #{tpu_custom_call.1} parent=5 // pred_check_branch
        %207 = sbr.rel (%p204) target = $region12
      $region11: #{tpu_custom_call.1} parent=5 // pred_region
        %s208 = ssub.s32 %s16, 1
        // Predicated region
        $region13: #{tpu_custom_call.1} parent=11 // pred_check
          %p209 = pneg %p63
        $region14: #{tpu_custom_call.1} parent=11 // pred_check_branch
          %211 = sbr.rel (%p209) target = $region16
        $region15: #{tpu_custom_call.1} parent=11 // pred_region
          _
        $region16: #{tpu_custom_call.1} parent=11 // pred_fallthru
          _
        // Predicated region
        $region17: #{tpu_custom_call.1} parent=11 // pred_check
          %p212 = pneg %p84
        $region18: #{tpu_custom_call.1} parent=11 // pred_check_branch
          %214 = sbr.rel (%p212) target = $region20
        $region19: #{tpu_custom_call.1} parent=11 // pred_region
          _
        $region20: #{tpu_custom_call.1} parent=11 // pred_fallthru
          _
        // Predicated region
        $region21: #{tpu_custom_call.1} parent=11 // pred_check
          %p215 = pneg %p105
        $region22: #{tpu_custom_call.1} parent=11 // pred_check_branch
          %217 = sbr.rel (%p215) target = $region24
        $region23: #{tpu_custom_call.1} parent=11 // pred_region
          _
        $region24: #{tpu_custom_call.1} parent=11 // pred_fallthru
          _
        // Predicated region
        $region25: #{tpu_custom_call.1} parent=11 // pred_check
          %p218 = pneg %p126
        $region26: #{tpu_custom_call.1} parent=11 // pred_check_branch
          %220 = sbr.rel (%p218) target = $region28
        $region27: #{tpu_custom_call.1} parent=11 // pred_region
          _
        $region28: #{tpu_custom_call.1} parent=11 // pred_fallthru
          _
        // Predicated region
        $region29: #{tpu_custom_call.1} parent=11 // pred_check
          %p221 = pneg %p147
        $region30: #{tpu_custom_call.1} parent=11 // pred_check_branch
          %223 = sbr.rel (%p221) target = $region32
        $region31: #{tpu_custom_call.1} parent=11 // pred_region
          _
        $region32: #{tpu_custom_call.1} parent=11 // pred_fallthru
          _
        // Predicated region
        $region33: #{tpu_custom_call.1} parent=11 // pred_check
          %p224 = pneg %p168
        $region34: #{tpu_custom_call.1} parent=11 // pred_check_branch
          %226 = sbr.rel (%p224) target = $region36
        $region35: #{tpu_custom_call.1} parent=11 // pred_region
          _
        $region36: #{tpu_custom_call.1} parent=11 // pred_fallthru
          _
      $region12: #{tpu_custom_call.1} parent=5 // pred_fallthru
        _
      %p227 = scmp.lt.s32.totalorder %s16, 2
      // Predicated region
      $region37: #{tpu_custom_call.1} parent=5 // pred_check
        %p228 = pneg %p227
      $region38: #{tpu_custom_call.1} parent=5 // pred_check_branch
        %230 = sbr.rel (%p228) target = $region40
      $region39: #{tpu_custom_call.1} parent=5 // pred_region
        // Predicated region
        $region41: #{tpu_custom_call.1} parent=39 // pred_check
          %p231 = pneg %p36
        $region42: #{tpu_custom_call.1} parent=39 // pred_check_branch
          %233 = sbr.rel (%p231) target = $region44
        $region43: #{tpu_custom_call.1} parent=39 // pred_region
          %p234 = scmp.lt.s32.totalorder %s16, 1
          %s235 = scalar_select %p234, %s16, 1
          %s236 = smul.addr %s235, 4
          %s237 = scalar_lea.vmem %s0, %s236
        $region44: #{tpu_custom_call.1} parent=39 // pred_fallthru
          _
      $region40: #{tpu_custom_call.1} parent=5 // pred_fallthru
        _
      %p238 = scmp.le.s32.totalorder 1, %s16
      %p239 = scmp.lt.s32.totalorder %s16, 3
      %p240 = pnand %p238, %p239
      %p241 = pneg %p240
      // Predicated region
      $region45: #{tpu_custom_call.1} parent=5 // pred_check
        _
      $region46: #{tpu_custom_call.1} parent=5 // pred_check_branch
        %243 = sbr.rel (%p240) target = $region48
      $region47: #{tpu_custom_call.1} parent=5 // pred_region
        %s244 = ssub.s32 %s16, 1
        %p245 = scmp.lt.s32.totalorder %s21, 1
        %s246 = scalar_select %p245, %s21, 1
        %s247 = smul.addr %s246, 4
        %s248 = scalar_lea.vmem %s0, %s247
        %p249 = pneg %p42
        %p250 = pneg %p39
        %p251 = pneg %p63
        %p252 = pneg %p60
        %p253 = pneg %p84
        %p254 = pneg %p81
        %p255 = pneg %p105
        %p256 = pneg %p102
        %p257 = pneg %p126
        %p258 = pneg %p123
        %p259 = pneg %p147
        %p260 = pneg %p144
        %p261 = pneg %p168
        %p262 = pneg %p165
        %p263 = pneg %p194
        %p264 = pneg %p191
        %s265 = sand.u32 %s181, 1
        %s266 = scalar_lea.sflag [#allocation3], %s265
        %s267 = sand.u32 %s181, 1
        %s268 = smul.addr %s267, 4
        %s269 = scalar_lea.vmem [#allocation2], %s268
        %p270 = scmp.lt.s32.totalorder %s21, 1
        %s271 = scalar_select %p270, %s21, 1
        %s272 = smul.addr %s271, 4
        %s273 = scalar_lea.vmem %s0, %s272
        %v276 = vld [vmem:[%s5] sm:$0xf]
        %v277 = vld [vmem:[%s273] sm:$0xf]
        %279 = vset.pattern.permute.xlu0 0
        %280 = vperm.xlu0 %279, %v276
        %v281 = vpop.permute.xlu0 %280
        %v283 = vmul.f32 %v277, %v281
        %284 = vset.pattern.permute.xlu0 1
        %285 = vperm.xlu0 %284, %v276
        %v286 = vpop.permute.xlu0 %285
        %v288 = vadd.f32 %v283, %v286
        %v289 = vmax.f32 %v288, 0.0
        %v290 = vld [vmem:[%s1] sm:$0xf]
        %v291 = vld [vmem:[%s1 + $0x4] sm:$0xf]
        %v292 = vld [vmem:[%s1 + $0x8] sm:$0xf]
        %v293 = vld [vmem:[%s1 + $0xc] sm:$0xf]
        %v294 = vld [vmem:[%s1 + $0x10] sm:$0xf]
        %v295 = vld [vmem:[%s1 + $0x14] sm:$0xf]
        %v296 = vld [vmem:[%s1 + $0x18] sm:$0xf]
        %v297 = vld [vmem:[%s1 + $0x1c] sm:$0xf]
        %v298 = vld [vmem:[%s1 + $0x20] sm:$0xf]
        %v299 = vld [vmem:[%s1 + $0x24] sm:$0xf]
        %v300 = vld [vmem:[%s1 + $0x28] sm:$0xf]
        %v301 = vld [vmem:[%s1 + $0x2c] sm:$0xf]
        %v302 = vpack.c.bf16 %v289, %v289
        %v303 = vld [vmem:[%s2] sm:$0xff]
        %v304 = vld [vmem:[%s2 + $0x8] sm:$0xff]
        %v305 = vld [vmem:[%s2 + $0x10] sm:$0xff]
        %v306 = vld [vmem:[%s2 + $0x18] sm:$0xff]
        %v307 = vld [vmem:[%s2 + $0x20] sm:$0xff]
        %v308 = vld [vmem:[%s2 + $0x28] sm:$0xff]
        %v309 = vld [vmem:[%s2 + $0x30] sm:$0xff]
        %v310 = vld [vmem:[%s2 + $0x38] sm:$0xff]
        %v311 = vld [vmem:[%s2 + $0x40] sm:$0xff]
        %v312 = vld [vmem:[%s2 + $0x48] sm:$0xff]
        %v313 = vld [vmem:[%s2 + $0x50] sm:$0xff]
        %v314 = vld [vmem:[%s2 + $0x58] sm:$0xff]
        %316 = vset.pattern.permute.xlu0 0
        %317 = vperm.xlu0 %316, %v303
        %v318 = vpop.permute.xlu0 %317
        %321 = vset.pattern.permute.xlu0 0
        %322 = vperm.xlu0 %321, %v304
        %v323 = vpop.permute.xlu0 %322
        %326 = vset.pattern.permute.xlu0 0
        %327 = vperm.xlu0 %326, %v305
        %v328 = vpop.permute.xlu0 %327
        %331 = vset.pattern.permute.xlu0 0
        %332 = vperm.xlu0 %331, %v306
        %v333 = vpop.permute.xlu0 %332
        %336 = vset.pattern.permute.xlu0 0
        %337 = vperm.xlu0 %336, %v307
        %v338 = vpop.permute.xlu0 %337
        %341 = vset.pattern.permute.xlu0 0
        %342 = vperm.xlu0 %341, %v308
        %v343 = vpop.permute.xlu0 %342
        %346 = vset.pattern.permute.xlu0 0
        %347 = vperm.xlu0 %346, %v309
        %v348 = vpop.permute.xlu0 %347
        %351 = vset.pattern.permute.xlu0 0
        %352 = vperm.xlu0 %351, %v310
        %v353 = vpop.permute.xlu0 %352
        %356 = vset.pattern.permute.xlu0 0
        %357 = vperm.xlu0 %356, %v311
        %v358 = vpop.permute.xlu0 %357
        %361 = vset.pattern.permute.xlu0 0
        %362 = vperm.xlu0 %361, %v312
        %v363 = vpop.permute.xlu0 %362
        %366 = vset.pattern.permute.xlu0 0
        %367 = vperm.xlu0 %366, %v313
        %v368 = vpop.permute.xlu0 %367
        %371 = vset.pattern.permute.xlu0 0
        %372 = vperm.xlu0 %371, %v314
        %v373 = vpop.permute.xlu0 %372
        %v387 = vunpack.c.l.b16 %v290
        %v388 = vunpack.c.l.b16 %v291
        %v389 = vunpack.c.l.b16 %v292
        %v390 = vunpack.c.l.b16 %v293
        %v391 = vunpack.c.l.b16 %v294
        %v392 = vunpack.c.l.b16 %v295
        %v393 = vunpack.c.l.b16 %v296
        %v394 = vunpack.c.l.b16 %v297
        %v395 = vunpack.c.l.b16 %v298
        %v396 = vunpack.c.l.b16 %v299
        %v397 = vunpack.c.l.b16 %v300
        %v398 = vunpack.c.l.b16 %v301
        %v399 = vpack.c.b16 %v388, %v387
        %v400 = vpack.c.b16 %v390, %v389
        %v401 = vpack.c.b16 %v392, %v391
        %v402 = vpack.c.b16 %v394, %v393
        %v403 = vpack.c.b16 %v396, %v395
        %v404 = vpack.c.b16 %v398, %v397
        %vm405 = vcmask 31744
        %v407 = vsel %vm405, %v399, 0
        %v410 = vsel %vm405, %v400, 0
        %v413 = vsel %vm405, %v401, 0
        %v416 = vsel %vm405, %v402, 0
        %v419 = vsel %vm405, %v403, 0
        %v422 = vsel %vm405, %v404, 0
        %vm424 = vcmask 1041408
        %v426 = vsel %vm424, %v302, 0
        %428 = vmatprep.subr.bf16.mxu0 0
        %429 = vmatpush1.bf16.msra.mxu0 %v426
        %430 = vmatprep.subr.bf16.mxu0 0
        %431 = vmatpush1.bf16.msra.mxu0 0
        %432 = vmatprep.subr.bf16.mxu0 0
        %433 = vmatpush1.bf16.msra.mxu0 0
        %434 = vmatprep.subr.bf16.mxu0 0
        %435 = vmatpush1.bf16.msra.mxu0 0
        %436 = vmatprep.subr.bf16.mxu0 0
        %437 = vmatpush1.bf16.msra.mxu0 0
        %438 = vmatprep.subr.bf16.mxu0 0
        %439 = vmatpush1.bf16.msra.mxu0 0
        %440 = vmatprep.subr.bf16.mxu0 0
        %441 = vmatpush1.bf16.msra.mxu0 0
        %442 = vmatprep.subr.bf16.mxu0 0
        %443 = vmatpush1.bf16.msra.mxu0 0
        %444 = vmatprep.subr.bf16.mxu0 0
        %445 = vmatpush1.bf16.msra.mxu0 0
        %446 = vmatprep.subr.bf16.mxu0 0
        %447 = vmatpush1.bf16.msra.mxu0 0
        %448 = vmatprep.subr.bf16.mxu0 0
        %449 = vmatpush1.bf16.msra.mxu0 0
        %450 = vmatprep.subr.bf16.mxu0 0
        %451 = vmatpush1.bf16.msra.mxu0 0
        %452 = vmatprep.subr.bf16.mxu0 0
        %453 = vmatpush1.bf16.msra.mxu0 0
        %454 = vmatprep.subr.bf16.mxu0 0
        %455 = vmatpush1.bf16.msra.mxu0 0
        %456 = vmatprep.subr.bf16.mxu0 0
        %457 = vmatpush1.bf16.msra.mxu0 0
        %458 = vmatprep.subr.bf16.mxu0 0
        %459 = vmatpush1.bf16.msra.mxu0 0
        %460 = vmatprep.mubr.bf16.mxu0 0
        %461 = vmatmul.mubr.bf16.gmra.mrb[0].mxu0 %v407
        %v462 = vpop.f32.mrb[0].mxu0
        %v463 = vadd.f32 %v318, %v462
        %v464 = vpop.f32.mrb[0].mxu0
        %v465 = vpop.f32.mrb[0].mxu0
        %v466 = vadd.f32 %v323, %v465
        %v467 = vpop.f32.mrb[0].mxu0
        %468 = vmatprep.mubr.bf16.mxu0 0
        %469 = vmatmul.mubr.bf16.gmra.mrb[0].mxu0 %v410
        %v470 = vpop.f32.mrb[0].mxu0
        %v471 = vadd.f32 %v328, %v470
        %v472 = vpop.f32.mrb[0].mxu0
        %v473 = vpop.f32.mrb[0].mxu0
        %v474 = vadd.f32 %v333, %v473
        %v475 = vpop.f32.mrb[0].mxu0
        %476 = vmatprep.mubr.bf16.mxu0 0
        %477 = vmatmul.mubr.bf16.gmra.mrb[0].mxu0 %v413
        %v478 = vpop.f32.mrb[0].mxu0
        %v479 = vadd.f32 %v338, %v478
        %v480 = vpop.f32.mrb[0].mxu0
        %v481 = vpop.f32.mrb[0].mxu0
        %v482 = vadd.f32 %v343, %v481
        %v483 = vpop.f32.mrb[0].mxu0
        %484 = vmatprep.mubr.bf16.mxu0 0
        %485 = vmatmul.mubr.bf16.gmra.mrb[0].mxu0 %v416
        %v486 = vpop.f32.mrb[0].mxu0
        %v487 = vadd.f32 %v348, %v486
        %v488 = vpop.f32.mrb[0].mxu0
        %v489 = vpop.f32.mrb[0].mxu0
        %v490 = vadd.f32 %v353, %v489
        %v491 = vpop.f32.mrb[0].mxu0
        %492 = vmatprep.mubr.bf16.mxu0 0
        %493 = vmatmul.mubr.bf16.gmra.mrb[0].mxu0 %v419
        %v494 = vpop.f32.mrb[0].mxu0
        %v495 = vadd.f32 %v358, %v494
        %v496 = vpop.f32.mrb[0].mxu0
        %v497 = vpop.f32.mrb[0].mxu0
        %v498 = vadd.f32 %v363, %v497
        %v499 = vpop.f32.mrb[0].mxu0
        %500 = vmatprep.mubr.bf16.mxu0 0
        %501 = vmatmul.mubr.bf16.gmra.mrb[0].mxu0 %v422
        %v502 = vpop.f32.mrb[0].mxu0
        %v503 = vadd.f32 %v368, %v502
        %v504 = vpop.f32.mrb[0].mxu0
        %v505 = vpop.f32.mrb[0].mxu0
        %v506 = vadd.f32 %v373, %v505
        %v507 = vpop.f32.mrb[0].mxu0
        %508 = vdwg.mxu0
        %v509 = vld [vmem:[%s3] sm:$0xf]
        %v510 = vld [vmem:[%s3 + $0x4] sm:$0xf]
        %v511 = vld [vmem:[%s3 + $0x8] sm:$0xf]
        %v512 = vld [vmem:[%s3 + $0xc] sm:$0xf]
        %v513 = vpack.c.bf16 %v277, %v277
        %v514 = vld [vmem:[%s4] sm:$0xff]
        %v515 = vld [vmem:[%s4 + $0x8] sm:$0xff]
        %v516 = vld [vmem:[%s4 + $0x10] sm:$0xff]
        %v517 = vld [vmem:[%s4 + $0x18] sm:$0xff]
        %519 = vset.pattern.permute.xlu0 0
        %520 = vperm.xlu0 %519, %v514
        %v521 = vpop.permute.xlu0 %520
        %524 = vset.pattern.permute.xlu0 0
        %525 = vperm.xlu0 %524, %v515
        %v526 = vpop.permute.xlu0 %525
        %529 = vset.pattern.permute.xlu0 0
        %530 = vperm.xlu0 %529, %v516
        %v531 = vpop.permute.xlu0 %530
        %534 = vset.pattern.permute.xlu0 0
        %535 = vperm.xlu0 %534, %v517
        %v536 = vpop.permute.xlu0 %535
        %v542 = vunpack.c.l.b16 %v509
        %v543 = vunpack.c.l.b16 %v510
        %v544 = vunpack.c.l.b16 %v511
        %v545 = vunpack.c.l.b16 %v512
        %v546 = vpack.c.b16 %v543, %v542
        %v547 = vpack.c.b16 %v545, %v544
        %v549 = vsel %vm405, %v546, 0
        %v552 = vsel %vm405, %v547, 0
        %v555 = vsel %vm424, %v513, 0
        %557 = vmatprep.subr.bf16.mxu0 0
        %558 = vmatpush1.bf16.msra.mxu0 %v555
        %559 = vmatprep.subr.bf16.mxu0 0
        %560 = vmatpush1.bf16.msra.mxu0 0
        %561 = vmatprep.subr.bf16.mxu0 0
        %562 = vmatpush1.bf16.msra.mxu0 0
        %563 = vmatprep.subr.bf16.mxu0 0
        %564 = vmatpush1.bf16.msra.mxu0 0
        %565 = vmatprep.subr.bf16.mxu0 0
        %566 = vmatpush1.bf16.msra.mxu0 0
        %567 = vmatprep.subr.bf16.mxu0 0
        %568 = vmatpush1.bf16.msra.mxu0 0
        %569 = vmatprep.subr.bf16.mxu0 0
        %570 = vmatpush1.bf16.msra.mxu0 0
        %571 = vmatprep.subr.bf16.mxu0 0
        %572 = vmatpush1.bf16.msra.mxu0 0
        %573 = vmatprep.subr.bf16.mxu0 0
        %574 = vmatpush1.bf16.msra.mxu0 0
        %575 = vmatprep.subr.bf16.mxu0 0
        %576 = vmatpush1.bf16.msra.mxu0 0
        %577 = vmatprep.subr.bf16.mxu0 0
        %578 = vmatpush1.bf16.msra.mxu0 0
        %579 = vmatprep.subr.bf16.mxu0 0
        %580 = vmatpush1.bf16.msra.mxu0 0
        %581 = vmatprep.subr.bf16.mxu0 0
        %582 = vmatpush1.bf16.msra.mxu0 0
        %583 = vmatprep.subr.bf16.mxu0 0
        %584 = vmatpush1.bf16.msra.mxu0 0
        %585 = vmatprep.subr.bf16.mxu0 0
        %586 = vmatpush1.bf16.msra.mxu0 0
        %587 = vmatprep.subr.bf16.mxu0 0
        %588 = vmatpush1.bf16.msra.mxu0 0
        %589 = vmatprep.mubr.bf16.mxu0 0
        %590 = vmatmul.mubr.bf16.gmra.mrb[0].mxu0 %v549
        %v591 = vpop.f32.mrb[0].mxu0
        %v592 = vadd.f32 %v521, %v591
        %v593 = vpop.f32.mrb[0].mxu0
        %v594 = vpop.f32.mrb[0].mxu0
        %v595 = vadd.f32 %v526, %v594
        %v596 = vpop.f32.mrb[0].mxu0
        %597 = vmatprep.mubr.bf16.mxu0 0
        %598 = vmatmul.mubr.bf16.gmra.mrb[0].mxu0 %v552
        %v599 = vpop.f32.mrb[0].mxu0
        %v600 = vadd.f32 %v531, %v599
        %v601 = vpop.f32.mrb[0].mxu0
        %v602 = vpop.f32.mrb[0].mxu0
        %v603 = vadd.f32 %v536, %v602
        %v604 = vpop.f32.mrb[0].mxu0
        %605 = vdwg.mxu0
        %v606 = vmax.f32 %v592, 0.0
        %v607 = vmax.f32 %v595, 0.0
        %v608 = vmax.f32 %v600, 0.0
        %v609 = vmax.f32 %v603, 0.0
        %v610 = vlaneseq
        %v611 = vshrl.u32 %v610, 7
        %v612 = vadd.s32 %v611, 8
        %v613 = vadd.s32 %v611, 16
        %v614 = vadd.s32 %v611, 24
        %v615 = vadd.s32 %v611, 32
        %v616 = vadd.s32 %v611, 40
        %v617 = vadd.s32 %v611, 48
        %v618 = vadd.s32 %v611, 56
        %v619 = vadd.s32 %v611, 64
        %v620 = vadd.s32 %v611, 72
        %v621 = vadd.s32 %v611, 80
        %v622 = vadd.s32 %v611, 88
        %v623 = vadd.s32 %v611, 96
        %v624 = vadd.s32 %v611, 104
        %v625 = vadd.s32 %v611, 112
        %v626 = vadd.s32 %v611, 120
        %v627 = vlaneseq
        %v628 = vand.u32 %v627, 127
        %v629 = vxor.u32 %v611, %v628
        %v630 = vxor.u32 %v612, %v628
        %v631 = vxor.u32 %v613, %v628
        %v632 = vxor.u32 %v614, %v628
        %v633 = vxor.u32 %v615, %v628
        %v634 = vxor.u32 %v616, %v628
        %v635 = vxor.u32 %v617, %v628
        %v636 = vxor.u32 %v618, %v628
        %v637 = vxor.u32 %v619, %v628
        %v638 = vxor.u32 %v620, %v628
        %v639 = vxor.u32 %v621, %v628
        %v640 = vxor.u32 %v622, %v628
        %v641 = vxor.u32 %v623, %v628
        %v642 = vxor.u32 %v624, %v628
        %v643 = vxor.u32 %v625, %v628
        %v644 = vxor.u32 %v626, %v628
        %vm645 = vcmp.lt.s32.totalorder %v629, 64
        %vm646 = vcmp.lt.s32.totalorder %v630, 64
        %vm647 = vcmp.lt.s32.totalorder %v631, 64
        %vm648 = vcmp.lt.s32.totalorder %v632, 64
        %vm649 = vcmp.lt.s32.totalorder %v633, 64
        %vm650 = vcmp.lt.s32.totalorder %v634, 64
        %vm651 = vcmp.lt.s32.totalorder %v635, 64
        %vm652 = vcmp.lt.s32.totalorder %v636, 64
        %vm653 = vcmp.lt.s32.totalorder %v637, 64
        %vm654 = vcmp.lt.s32.totalorder %v638, 64
        %vm655 = vcmp.lt.s32.totalorder %v639, 64
        %vm656 = vcmp.lt.s32.totalorder %v640, 64
        %vm657 = vcmp.lt.s32.totalorder %v641, 64
        %vm658 = vcmp.lt.s32.totalorder %v642, 64
        %vm659 = vcmp.lt.s32.totalorder %v643, 64
        %vm660 = vcmp.lt.s32.totalorder %v644, 64
        %v661 = vsel %vm645, 0.0, -1e+30
        %v662 = vsel %vm646, 0.0, -1e+30
        %v663 = vsel %vm647, 0.0, -1e+30
        %v664 = vsel %vm648, 0.0, -1e+30
        %v665 = vsel %vm649, 0.0, -1e+30
        %v666 = vsel %vm650, 0.0, -1e+30
        %v667 = vsel %vm651, 0.0, -1e+30
        %v668 = vsel %vm652, 0.0, -1e+30
        %v669 = vsel %vm653, 0.0, -1e+30
        %v670 = vsel %vm654, 0.0, -1e+30
        %v671 = vsel %vm655, 0.0, -1e+30
        %v672 = vsel %vm656, 0.0, -1e+30
        %v673 = vsel %vm657, 0.0, -1e+30
        %v674 = vsel %vm658, 0.0, -1e+30
        %v675 = vsel %vm659, 0.0, -1e+30
        %v676 = vsel %vm660, 0.0, -1e+30
        %v677 = vpack.c.bf16 %v463, %v463
        %v678 = vpack.c.bf16 %v479, %v479
        %v679 = vpack.c.bf16 %v495, %v495
        %680 = vxpose.xlu0.c.b16.start [1/8] %v677, 128
        %681 = vxpose.xlu0.c.b16.cont [2/8] 0, 128
        %682 = vxpose.xlu0.c.b16.cont [3/8] 0, 128
        %683 = vxpose.xlu0.c.b16.cont [4/8] 0, 128
        %684 = vxpose.xlu0.c.b16.cont [5/8] 0, 128
        %685 = vxpose.xlu0.c.b16.cont [6/8] 0, 128
        %686 = vxpose.xlu0.c.b16.cont [7/8] 0, 128
        %687 = vxpose.xlu0.c.b16.end [8/8] 0, 128
        %v688 = vpop.trf.xlu0
        %v689 = vpop.trf.xlu0
        %v690 = vpop.trf.xlu0
        %v691 = vpop.trf.xlu0
        %v692 = vpop.trf.xlu0
        %v693 = vpop.trf.xlu0
        %v694 = vpop.trf.xlu0
        %v695 = vpop.trf.xlu0
        %vm696 = vcmask 64512
        %v698 = vsel %vm696, %v688, 0
        %v701 = vsel %vm696, %v689, 0
        %v704 = vsel %vm696, %v690, 0
        %v707 = vsel %vm696, %v691, 0
        %v710 = vsel %vm696, %v692, 0
        %v713 = vsel %vm696, %v693, 0
        %v716 = vsel %vm696, %v694, 0
        %v719 = vsel %vm696, %v695, 0
        %vm721 = vcmask 1043456
        %v723 = vsel %vm721, %v678, 0
        %725 = vmatprep.subr.bf16.mxu0 0
        %726 = vmatpush1.bf16.msra.mxu0 %v723
        %727 = vmatprep.subr.bf16.mxu0 0
        %728 = vmatpush1.bf16.msra.mxu0 0
        %729 = vmatprep.subr.bf16.mxu0 0
        %730 = vmatpush1.bf16.msra.mxu0 0
        %731 = vmatprep.subr.bf16.mxu0 0
        %732 = vmatpush1.bf16.msra.mxu0 0
        %733 = vmatprep.subr.bf16.mxu0 0
        %734 = vmatpush1.bf16.msra.mxu0 0
        %735 = vmatprep.subr.bf16.mxu0 0
        %736 = vmatpush1.bf16.msra.mxu0 0
        %737 = vmatprep.subr.bf16.mxu0 0
        %738 = vmatpush1.bf16.msra.mxu0 0
        %739 = vmatprep.subr.bf16.mxu0 0
        %740 = vmatpush1.bf16.msra.mxu0 0
        %741 = vmatprep.subr.bf16.mxu0 0
        %742 = vmatpush1.bf16.msra.mxu0 0
        %743 = vmatprep.subr.bf16.mxu0 0
        %744 = vmatpush1.bf16.msra.mxu0 0
        %745 = vmatprep.subr.bf16.mxu0 0
        %746 = vmatpush1.bf16.msra.mxu0 0
        %747 = vmatprep.subr.bf16.mxu0 0
        %748 = vmatpush1.bf16.msra.mxu0 0
        %749 = vmatprep.subr.bf16.mxu0 0
        %750 = vmatpush1.bf16.msra.mxu0 0
        %751 = vmatprep.subr.bf16.mxu0 0
        %752 = vmatpush1.bf16.msra.mxu0 0
        %753 = vmatprep.subr.bf16.mxu0 0
        %754 = vmatpush1.bf16.msra.mxu0 0
        %755 = vmatprep.subr.bf16.mxu0 0
        %756 = vmatpush1.bf16.msra.mxu0 0
        %757 = vmatprep.mubr.bf16.mxu0 0
        %758 = vmatmul.mubr.bf16.gmra.mrb[0].mxu0 %v698
        %v759 = vpop.f32.mrb[0].mxu0
        %v760 = vadd.f32 %v661, %v759
        %v761 = vpop.f32.mrb[0].mxu0
        %v762 = vpop.f32.mrb[0].mxu0
        %v763 = vadd.f32 %v662, %v762
        %v764 = vpop.f32.mrb[0].mxu0
        %765 = vmatprep.mubr.bf16.mxu0 0
        %766 = vmatmul.mubr.bf16.gmra.mrb[0].mxu0 %v701
        %v767 = vpop.f32.mrb[0].mxu0
        %v768 = vadd.f32 %v663, %v767
        %v769 = vpop.f32.mrb[0].mxu0
        %v770 = vpop.f32.mrb[0].mxu0
        %v771 = vadd.f32 %v664, %v770
        %v772 = vpop.f32.mrb[0].mxu0
        %773 = vmatprep.mubr.bf16.mxu0 0
        %774 = vmatmul.mubr.bf16.gmra.mrb[0].mxu0 %v704
        %v775 = vpop.f32.mrb[0].mxu0
        %v776 = vadd.f32 %v665, %v775
        %v777 = vpop.f32.mrb[0].mxu0
        %v778 = vpop.f32.mrb[0].mxu0
        %v779 = vadd.f32 %v666, %v778
        %v780 = vpop.f32.mrb[0].mxu0
        %781 = vmatprep.mubr.bf16.mxu0 0
        %782 = vmatmul.mubr.bf16.gmra.mrb[0].mxu0 %v707
        %v783 = vpop.f32.mrb[0].mxu0
        %v784 = vadd.f32 %v667, %v783
        %v785 = vpop.f32.mrb[0].mxu0
        %v786 = vpop.f32.mrb[0].mxu0
        %v787 = vadd.f32 %v668, %v786
        %v788 = vpop.f32.mrb[0].mxu0
        %789 = vmatprep.mubr.bf16.mxu0 0
        %790 = vmatmul.mubr.bf16.gmra.mrb[0].mxu0 %v710
        %v791 = vpop.f32.mrb[0].mxu0
        %v792 = vadd.f32 %v669, %v791
        %v793 = vpop.f32.mrb[0].mxu0
        %v794 = vpop.f32.mrb[0].mxu0
        %v795 = vadd.f32 %v670, %v794
        %v796 = vpop.f32.mrb[0].mxu0
        %797 = vmatprep.mubr.bf16.mxu0 0
        %798 = vmatmul.mubr.bf16.gmra.mrb[0].mxu0 %v713
        %v799 = vpop.f32.mrb[0].mxu0
        %v800 = vadd.f32 %v671, %v799
        %v801 = vpop.f32.mrb[0].mxu0
        %v802 = vpop.f32.mrb[0].mxu0
        %v803 = vadd.f32 %v672, %v802
        %v804 = vpop.f32.mrb[0].mxu0
        %805 = vmatprep.mubr.bf16.mxu0 0
        %806 = vmatmul.mubr.bf16.gmra.mrb[0].mxu0 %v716
        %v807 = vpop.f32.mrb[0].mxu0
        %v808 = vadd.f32 %v673, %v807
        %v809 = vpop.f32.mrb[0].mxu0
        %v810 = vpop.f32.mrb[0].mxu0
        %v811 = vadd.f32 %v674, %v810
        %v812 = vpop.f32.mrb[0].mxu0
        %813 = vmatprep.mubr.bf16.mxu0 0
        %814 = vmatmul.mubr.bf16.gmra.mrb[0].mxu0 %v719
        %v815 = vpop.f32.mrb[0].mxu0
        %v816 = vadd.f32 %v675, %v815
        %v817 = vpop.f32.mrb[0].mxu0
        %v818 = vpop.f32.mrb[0].mxu0
        %v819 = vadd.f32 %v676, %v818
        %v820 = vpop.f32.mrb[0].mxu0
        %821 = vdwg.mxu0
        %822 = vmax.xlane.f32.xlu0 %v760
        %v823 = vpop.xlane.xlu0 %822
        %824 = vmax.xlane.f32.xlu0 %v763
        %v825 = vpop.xlane.xlu0 %824
        %826 = vmax.xlane.f32.xlu0 %v768
        %v827 = vpop.xlane.xlu0 %826
        %828 = vmax.xlane.f32.xlu0 %v771
        %v829 = vpop.xlane.xlu0 %828
        %830 = vmax.xlane.f32.xlu0 %v776
        %v831 = vpop.xlane.xlu0 %830
        %832 = vmax.xlane.f32.xlu0 %v779
        %v833 = vpop.xlane.xlu0 %832
        %834 = vmax.xlane.f32.xlu0 %v784
        %v835 = vpop.xlane.xlu0 %834
        %836 = vmax.xlane.f32.xlu0 %v787
        %v837 = vpop.xlane.xlu0 %836
        %838 = vmax.xlane.f32.xlu0 %v792
        %v839 = vpop.xlane.xlu0 %838
        %840 = vmax.xlane.f32.xlu0 %v795
        %v841 = vpop.xlane.xlu0 %840
        %842 = vmax.xlane.f32.xlu0 %v800
        %v843 = vpop.xlane.xlu0 %842
        %844 = vmax.xlane.f32.xlu0 %v803
        %v845 = vpop.xlane.xlu0 %844
        %846 = vmax.xlane.f32.xlu0 %v808
        %v847 = vpop.xlane.xlu0 %846
        %848 = vmax.xlane.f32.xlu0 %v811
        %v849 = vpop.xlane.xlu0 %848
        %850 = vmax.xlane.f32.xlu0 %v816
        %v851 = vpop.xlane.xlu0 %850
        %852 = vmax.xlane.f32.xlu0 %v819
        %v853 = vpop.xlane.xlu0 %852
        %v854 = vsub.f32 %v760, %v823
        %v855 = vsub.f32 %v763, %v825
        %v856 = vsub.f32 %v768, %v827
        %v857 = vsub.f32 %v771, %v829
        %v858 = vsub.f32 %v776, %v831
        %v859 = vsub.f32 %v779, %v833
        %v860 = vsub.f32 %v784, %v835
        %v861 = vsub.f32 %v787, %v837
        %v862 = vsub.f32 %v792, %v839
        %v863 = vsub.f32 %v795, %v841
        %v864 = vsub.f32 %v800, %v843
        %v865 = vsub.f32 %v803, %v845
        %v866 = vsub.f32 %v808, %v847
        %v867 = vsub.f32 %v811, %v849
        %v868 = vsub.f32 %v816, %v851
        %v869 = vsub.f32 %v819, %v853
        %v870 = vmul.f32 %v854, 1.442695
        %v871 = vpow.pop %v870
        %v872 = vmul.f32 %v855, 1.442695
        %v873 = vpow.pop %v872
        %v874 = vmul.f32 %v856, 1.442695
        %v875 = vpow.pop %v874
        %v876 = vmul.f32 %v857, 1.442695
        %v877 = vpow.pop %v876
        %v878 = vmul.f32 %v858, 1.442695
        %v879 = vpow.pop %v878
        %v880 = vmul.f32 %v859, 1.442695
        %v881 = vpow.pop %v880
        %v882 = vmul.f32 %v860, 1.442695
        %v883 = vpow.pop %v882
        %v884 = vmul.f32 %v861, 1.442695
        %v885 = vpow.pop %v884
        %v886 = vmul.f32 %v862, 1.442695
        %v887 = vpow.pop %v886
        %v888 = vmul.f32 %v863, 1.442695
        %v889 = vpow.pop %v888
        %v890 = vmul.f32 %v864, 1.442695
        %v891 = vpow.pop %v890
        %v892 = vmul.f32 %v865, 1.442695
        %v893 = vpow.pop %v892
        %v894 = vmul.f32 %v866, 1.442695
        %v895 = vpow.pop %v894
        %v896 = vmul.f32 %v867, 1.442695
        %v897 = vpow.pop %v896
        %v898 = vmul.f32 %v868, 1.442695
        %v899 = vpow.pop %v898
        %v900 = vmul.f32 %v869, 1.442695
        %v901 = vpow.pop %v900
        %v902 = vpack.c.bf16 %v873, %v871
        %v903 = vpack.c.bf16 %v877, %v875
        %v904 = vpack.c.bf16 %v881, %v879
        %v905 = vpack.c.bf16 %v885, %v883
        %v906 = vpack.c.bf16 %v889, %v887
        %v907 = vpack.c.bf16 %v893, %v891
        %v908 = vpack.c.bf16 %v897, %v895
        %v909 = vpack.c.bf16 %v901, %v899
        %910 = vmatprep.subr.bf16.mxu0 0
        %911 = vmatpush1.bf16.xpose.msra.mxu0 %v902
        %912 = vmatprep.subr.bf16.mxu0 0
        %913 = vmatpush1.bf16.xpose.msra.mxu0 %v903
        %914 = vmatprep.subr.bf16.mxu0 0
        %915 = vmatpush1.bf16.xpose.msra.mxu0 %v904
        %916 = vmatprep.subr.bf16.mxu0 0
        %917 = vmatpush1.bf16.xpose.msra.mxu0 %v905
        %918 = vmatprep.subr.bf16.mxu0 0
        %919 = vmatpush1.bf16.xpose.msra.mxu0 %v906
        %920 = vmatprep.subr.bf16.mxu0 0
        %921 = vmatpush1.bf16.xpose.msra.mxu0 %v907
        %922 = vmatprep.subr.bf16.mxu0 0
        %923 = vmatpush1.bf16.xpose.msra.mxu0 %v908
        %924 = vmatprep.subr.bf16.mxu0 0
        %925 = vmatpush1.bf16.xpose.msra.mxu0 %v909
        %926 = vmatprep.subr.bf16.mxu0 0
        %927 = vmatpush1.bf16.xpose.msra.mxu0 0
        %928 = vmatprep.subr.bf16.mxu0 0
        %929 = vmatpush1.bf16.xpose.msra.mxu0 0
        %930 = vmatprep.subr.bf16.mxu0 0
        %931 = vmatpush1.bf16.xpose.msra.mxu0 0
        %932 = vmatprep.subr.bf16.mxu0 0
        %933 = vmatpush1.bf16.xpose.msra.mxu0 0
        %934 = vmatprep.subr.bf16.mxu0 0
        %935 = vmatpush1.bf16.xpose.msra.mxu0 0
        %936 = vmatprep.subr.bf16.mxu0 0
        %937 = vmatpush1.bf16.xpose.msra.mxu0 0
        %938 = vmatprep.subr.bf16.mxu0 0
        %939 = vmatpush1.bf16.xpose.msra.mxu0 0
        %940 = vmatprep.subr.bf16.mxu0 0
        %941 = vmatpush1.bf16.xpose.msra.mxu0 0
        %942 = vmatprep.mubr.bf16.mxu0 0
        %943 = vmatmul.mubr.bf16.gmra.mrb[0].mxu0 %v679
        %v944 = vpop.f32.mrb[0].mxu0
        %v945 = vadd.f32 0.0, %v944
        %v946 = vpop.f32.mrb[0].mxu0
        %v947 = vpop.f32.mrb[0].mxu0
        %v948 = vpop.f32.mrb[0].mxu0
        %949 = vdwg.mxu0
        %950 = vmatprep.subr.bf16.mxu0 0
        %951 = vmatpush1.bf16.xpose.msra.mxu0 %v902
        %952 = vmatprep.subr.bf16.mxu0 0
        %953 = vmatpush1.bf16.xpose.msra.mxu0 %v903
        %954 = vmatprep.subr.bf16.mxu0 0
        %955 = vmatpush1.bf16.xpose.msra.mxu0 %v904
        %956 = vmatprep.subr.bf16.mxu0 0
        %957 = vmatpush1.bf16.xpose.msra.mxu0 %v905
        %958 = vmatprep.subr.bf16.mxu0 0
        %959 = vmatpush1.bf16.xpose.msra.mxu0 %v906
        %960 = vmatprep.subr.bf16.mxu0 0
        %961 = vmatpush1.bf16.xpose.msra.mxu0 %v907
        %962 = vmatprep.subr.bf16.mxu0 0
        %963 = vmatpush1.bf16.xpose.msra.mxu0 %v908
        %964 = vmatprep.subr.bf16.mxu0 0
        %965 = vmatpush1.bf16.xpose.msra.mxu0 %v909
        %966 = vmatprep.subr.bf16.mxu0 0
        %967 = vmatpush1.bf16.xpose.msra.mxu0 0
        %968 = vmatprep.subr.bf16.mxu0 0
        %969 = vmatpush1.bf16.xpose.msra.mxu0 0
        %970 = vmatprep.subr.bf16.mxu0 0
        %971 = vmatpush1.bf16.xpose.msra.mxu0 0
        %972 = vmatprep.subr.bf16.mxu0 0
        %973 = vmatpush1.bf16.xpose.msra.mxu0 0
        %974 = vmatprep.subr.bf16.mxu0 0
        %975 = vmatpush1.bf16.xpose.msra.mxu0 0
        %976 = vmatprep.subr.bf16.mxu0 0
        %977 = vmatpush1.bf16.xpose.msra.mxu0 0
        %978 = vmatprep.subr.bf16.mxu0 0
        %979 = vmatpush1.bf16.xpose.msra.mxu0 0
        %980 = vmatprep.subr.bf16.mxu0 0
        %981 = vmatpush1.bf16.xpose.msra.mxu0 0
        %982 = vmatprep.mubr.bf16.mxu0 0
        %983 = vmatmul.mubr.bf16.gmra.mrb[0].mxu0 1065369472
        %v984 = vpop.f32.mrb[0].mxu0
        %v985 = vadd.f32 0.0, %v984
        %v986 = vpop.f32.mrb[0].mxu0
        %v987 = vpop.f32.mrb[0].mxu0
        %v988 = vpop.f32.mrb[0].mxu0
        %989 = vdwg.mxu0
        %v990 = vrcp.pop %v985
        %v991 = vlaneseq
        %v992 = vshrl.u32 %v991, 7
        %v993 = vsub.s32 0, %v992
        %v994 = vrot.slane %v990, %v993
        %v995 = vmul.f32 %v945, %v994
        %v996 = vpack.c.bf16 %v466, %v466
        %v997 = vpack.c.bf16 %v482, %v482
        %v998 = vpack.c.bf16 %v498, %v498
        %999 = vxpose.xlu0.c.b16.start [1/8] %v996, 128
        %1000 = vxpose.xlu0.c.b16.cont [2/8] 0, 128
        %1001 = vxpose.xlu0.c.b16.cont [3/8] 0, 128
        %1002 = vxpose.xlu0.c.b16.cont [4/8] 0, 128
        %1003 = vxpose.xlu0.c.b16.cont [5/8] 0, 128
        %1004 = vxpose.xlu0.c.b16.cont [6/8] 0, 128
        %1005 = vxpose.xlu0.c.b16.cont [7/8] 0, 128
        %1006 = vxpose.xlu0.c.b16.end [8/8] 0, 128
        %v1007 = vpop.trf.xlu0
        %v1008 = vpop.trf.xlu0
        %v1009 = vpop.trf.xlu0
        %v1010 = vpop.trf.xlu0
        %v1011 = vpop.trf.xlu0
        %v1012 = vpop.trf.xlu0
        %v1013 = vpop.trf.xlu0
        %v1014 = vpop.trf.xlu0
        %v1016 = vsel %vm696, %v1007, 0
        %v1019 = vsel %vm696, %v1008, 0
        %v1022 = vsel %vm696, %v1009, 0
        %v1025 = vsel %vm696, %v1010, 0
        %v1028 = vsel %vm696, %v1011, 0
        %v1031 = vsel %vm696, %v1012, 0
        %v1034 = vsel %vm696, %v1013, 0
        %v1037 = vsel %vm696, %v1014, 0
        %v1040 = vsel %vm721, %v997, 0
        %1042 = vmatprep.subr.bf16.mxu0 0
        %1043 = vmatpush1.bf16.msra.mxu0 %v1040
        %1044 = vmatprep.subr.bf16.mxu0 0
        %1045 = vmatpush1.bf16.msra.mxu0 0
        %1046 = vmatprep.subr.bf16.mxu0 0
        %1047 = vmatpush1.bf16.msra.mxu0 0
        %1048 = vmatprep.subr.bf16.mxu0 0
        %1049 = vmatpush1.bf16.msra.mxu0 0
        %1050 = vmatprep.subr.bf16.mxu0 0
        %1051 = vmatpush1.bf16.msra.mxu0 0
        %1052 = vmatprep.subr.bf16.mxu0 0
        %1053 = vmatpush1.bf16.msra.mxu0 0
        %1054 = vmatprep.subr.bf16.mxu0 0
        %1055 = vmatpush1.bf16.msra.mxu0 0
        %1056 = vmatprep.subr.bf16.mxu0 0
        %1057 = vmatpush1.bf16.msra.mxu0 0
        %1058 = vmatprep.subr.bf16.mxu0 0
        %1059 = vmatpush1.bf16.msra.mxu0 0
        %1060 = vmatprep.subr.bf16.mxu0 0
        %1061 = vmatpush1.bf16.msra.mxu0 0
        %1062 = vmatprep.subr.bf16.mxu0 0
        %1063 = vmatpush1.bf16.msra.mxu0 0
        %1064 = vmatprep.subr.bf16.mxu0 0
        %1065 = vmatpush1.bf16.msra.mxu0 0
        %1066 = vmatprep.subr.bf16.mxu0 0
        %1067 = vmatpush1.bf16.msra.mxu0 0
        %1068 = vmatprep.subr.bf16.mxu0 0
        %1069 = vmatpush1.bf16.msra.mxu0 0
        %1070 = vmatprep.subr.bf16.mxu0 0
        %1071 = vmatpush1.bf16.msra.mxu0 0
        %1072 = vmatprep.subr.bf16.mxu0 0
        %1073 = vmatpush1.bf16.msra.mxu0 0
        %1074 = vmatprep.mubr.bf16.mxu0 0
        %1075 = vmatmul.mubr.bf16.gmra.mrb[0].mxu0 %v1016
        %v1076 = vpop.f32.mrb[0].mxu0
        %v1077 = vadd.f32 %v661, %v1076
        %v1078 = vpop.f32.mrb[0].mxu0
        %v1079 = vpop.f32.mrb[0].mxu0
        %v1080 = vadd.f32 %v662, %v1079
        %v1081 = vpop.f32.mrb[0].mxu0
        %1082 = vmatprep.mubr.bf16.mxu0 0
        %1083 = vmatmul.mubr.bf16.gmra.mrb[0].mxu0 %v1019
        %v1084 = vpop.f32.mrb[0].mxu0
        %v1085 = vadd.f32 %v663, %v1084
        %v1086 = vpop.f32.mrb[0].mxu0
        %v1087 = vpop.f32.mrb[0].mxu0
        %v1088 = vadd.f32 %v664, %v1087
        %v1089 = vpop.f32.mrb[0].mxu0
        %1090 = vmatprep.mubr.bf16.mxu0 0
        %1091 = vmatmul.mubr.bf16.gmra.mrb[0].mxu0 %v1022
        %v1092 = vpop.f32.mrb[0].mxu0
        %v1093 = vadd.f32 %v665, %v1092
        %v1094 = vpop.f32.mrb[0].mxu0
        %v1095 = vpop.f32.mrb[0].mxu0
        %v1096 = vadd.f32 %v666, %v1095
        %v1097 = vpop.f32.mrb[0].mxu0
        %1098 = vmatprep.mubr.bf16.mxu0 0
        %1099 = vmatmul.mubr.bf16.gmra.mrb[0].mxu0 %v1025
        %v1100 = vpop.f32.mrb[0].mxu0
        %v1101 = vadd.f32 %v667, %v1100
        %v1102 = vpop.f32.mrb[0].mxu0
        %v1103 = vpop.f32.mrb[0].mxu0
        %v1104 = vadd.f32 %v668, %v1103
        %v1105 = vpop.f32.mrb[0].mxu0
        %1106 = vmatprep.mubr.bf16.mxu0 0
        %1107 = vmatmul.mubr.bf16.gmra.mrb[0].mxu0 %v1028
        %v1108 = vpop.f32.mrb[0].mxu0
        %v1109 = vadd.f32 %v669, %v1108
        %v1110 = vpop.f32.mrb[0].mxu0
        %v1111 = vpop.f32.mrb[0].mxu0
        %v1112 = vadd.f32 %v670, %v1111
        %v1113 = vpop.f32.mrb[0].mxu0
        %1114 = vmatprep.mubr.bf16.mxu0 0
        %1115 = vmatmul.mubr.bf16.gmra.mrb[0].mxu0 %v1031
        %v1116 = vpop.f32.mrb[0].mxu0
        %v1117 = vadd.f32 %v671, %v1116
        %v1118 = vpop.f32.mrb[0].mxu0
        %v1119 = vpop.f32.mrb[0].mxu0
        %v1120 = vadd.f32 %v672, %v1119
        %v1121 = vpop.f32.mrb[0].mxu0
        %1122 = vmatprep.mubr.bf16.mxu0 0
        %1123 = vmatmul.mubr.bf16.gmra.mrb[0].mxu0 %v1034
        %v1124 = vpop.f32.mrb[0].mxu0
        %v1125 = vadd.f32 %v673, %v1124
        %v1126 = vpop.f32.mrb[0].mxu0
        %v1127 = vpop.f32.mrb[0].mxu0
        %v1128 = vadd.f32 %v674, %v1127
        %v1129 = vpop.f32.mrb[0].mxu0
        %1130 = vmatprep.mubr.bf16.mxu0 0
        %1131 = vmatmul.mubr.bf16.gmra.mrb[0].mxu0 %v1037
        %v1132 = vpop.f32.mrb[0].mxu0
        %v1133 = vadd.f32 %v675, %v1132
        %v1134 = vpop.f32.mrb[0].mxu0
        %v1135 = vpop.f32.mrb[0].mxu0
        %v1136 = vadd.f32 %v676, %v1135
        %v1137 = vpop.f32.mrb[0].mxu0
        %1138 = vdwg.mxu0
        %1139 = vmax.xlane.f32.xlu0 %v1077
        %v1140 = vpop.xlane.xlu0 %1139
        %1141 = vmax.xlane.f32.xlu0 %v1080
        %v1142 = vpop.xlane.xlu0 %1141
        %1143 = vmax.xlane.f32.xlu0 %v1085
        %v1144 = vpop.xlane.xlu0 %1143
        %1145 = vmax.xlane.f32.xlu0 %v1088
        %v1146 = vpop.xlane.xlu0 %1145
        %1147 = vmax.xlane.f32.xlu0 %v1093
        %v1148 = vpop.xlane.xlu0 %1147
        %1149 = vmax.xlane.f32.xlu0 %v1096
        %v1150 = vpop.xlane.xlu0 %1149
        %1151 = vmax.xlane.f32.xlu0 %v1101
        %v1152 = vpop.xlane.xlu0 %1151
        %1153 = vmax.xlane.f32.xlu0 %v1104
        %v1154 = vpop.xlane.xlu0 %1153
        %1155 = vmax.xlane.f32.xlu0 %v1109
        %v1156 = vpop.xlane.xlu0 %1155
        %1157 = vmax.xlane.f32.xlu0 %v1112
        %v1158 = vpop.xlane.xlu0 %1157
        %1159 = vmax.xlane.f32.xlu0 %v1117
        %v1160 = vpop.xlane.xlu0 %1159
        %1161 = vmax.xlane.f32.xlu0 %v1120
        %v1162 = vpop.xlane.xlu0 %1161
        %1163 = vmax.xlane.f32.xlu0 %v1125
        %v1164 = vpop.xlane.xlu0 %1163
        %1165 = vmax.xlane.f32.xlu0 %v1128
        %v1166 = vpop.xlane.xlu0 %1165
        %1167 = vmax.xlane.f32.xlu0 %v1133
        %v1168 = vpop.xlane.xlu0 %1167
        %1169 = vmax.xlane.f32.xlu0 %v1136
        %v1170 = vpop.xlane.xlu0 %1169
        %v1171 = vsub.f32 %v1077, %v1140
        %v1172 = vsub.f32 %v1080, %v1142
        %v1173 = vsub.f32 %v1085, %v1144
        %v1174 = vsub.f32 %v1088, %v1146
        %v1175 = vsub.f32 %v1093, %v1148
        %v1176 = vsub.f32 %v1096, %v1150
        %v1177 = vsub.f32 %v1101, %v1152
        %v1178 = vsub.f32 %v1104, %v1154
        %v1179 = vsub.f32 %v1109, %v1156
        %v1180 = vsub.f32 %v1112, %v1158
        %v1181 = vsub.f32 %v1117, %v1160
        %v1182 = vsub.f32 %v1120, %v1162
        %v1183 = vsub.f32 %v1125, %v1164
        %v1184 = vsub.f32 %v1128, %v1166
        %v1185 = vsub.f32 %v1133, %v1168
        %v1186 = vsub.f32 %v1136, %v1170
        %v1187 = vmul.f32 %v1171, 1.442695
        %v1188 = vpow.pop %v1187
        %v1189 = vmul.f32 %v1172, 1.442695
        %v1190 = vpow.pop %v1189
        %v1191 = vmul.f32 %v1173, 1.442695
        %v1192 = vpow.pop %v1191
        %v1193 = vmul.f32 %v1174, 1.442695
        %v1194 = vpow.pop %v1193
        %v1195 = vmul.f32 %v1175, 1.442695
        %v1196 = vpow.pop %v1195
        %v1197 = vmul.f32 %v1176, 1.442695
        %v1198 = vpow.pop %v1197
        %v1199 = vmul.f32 %v1177, 1.442695
        %v1200 = vpow.pop %v1199
        %v1201 = vmul.f32 %v1178, 1.442695
        %v1202 = vpow.pop %v1201
        %v1203 = vmul.f32 %v1179, 1.442695
        %v1204 = vpow.pop %v1203
        %v1205 = vmul.f32 %v1180, 1.442695
        %v1206 = vpow.pop %v1205
        %v1207 = vmul.f32 %v1181, 1.442695
        %v1208 = vpow.pop %v1207
        %v1209 = vmul.f32 %v1182, 1.442695
        %v1210 = vpow.pop %v1209
        %v1211 = vmul.f32 %v1183, 1.442695
        %v1212 = vpow.pop %v1211
        %v1213 = vmul.f32 %v1184, 1.442695
        %v1214 = vpow.pop %v1213
        %v1215 = vmul.f32 %v1185, 1.442695
        %v1216 = vpow.pop %v1215
        %v1217 = vmul.f32 %v1186, 1.442695
        %v1218 = vpow.pop %v1217
        %v1219 = vpack.c.bf16 %v1190, %v1188
        %v1220 = vpack.c.bf16 %v1194, %v1192
        %v1221 = vpack.c.bf16 %v1198, %v1196
        %v1222 = vpack.c.bf16 %v1202, %v1200
        %v1223 = vpack.c.bf16 %v1206, %v1204
        %v1224 = vpack.c.bf16 %v1210, %v1208
        %v1225 = vpack.c.bf16 %v1214, %v1212
        %v1226 = vpack.c.bf16 %v1218, %v1216
        %1227 = vmatprep.subr.bf16.mxu0 0
        %1228 = vmatpush1.bf16.xpose.msra.mxu0 %v1219
        %1229 = vmatprep.subr.bf16.mxu0 0
        %1230 = vmatpush1.bf16.xpose.msra.mxu0 %v1220
        %1231 = vmatprep.subr.bf16.mxu0 0
        %1232 = vmatpush1.bf16.xpose.msra.mxu0 %v1221
        %1233 = vmatprep.subr.bf16.mxu0 0
        %1234 = vmatpush1.bf16.xpose.msra.mxu0 %v1222
        %1235 = vmatprep.subr.bf16.mxu0 0
        %1236 = vmatpush1.bf16.xpose.msra.mxu0 %v1223
        %1237 = vmatprep.subr.bf16.mxu0 0
        %1238 = vmatpush1.bf16.xpose.msra.mxu0 %v1224
        %1239 = vmatprep.subr.bf16.mxu0 0
        %1240 = vmatpush1.bf16.xpose.msra.mxu0 %v1225
        %1241 = vmatprep.subr.bf16.mxu0 0
        %1242 = vmatpush1.bf16.xpose.msra.mxu0 %v1226
        %1243 = vmatprep.subr.bf16.mxu0 0
        %1244 = vmatpush1.bf16.xpose.msra.mxu0 0
        %1245 = vmatprep.subr.bf16.mxu0 0
        %1246 = vmatpush1.bf16.xpose.msra.mxu0 0
        %1247 = vmatprep.subr.bf16.mxu0 0
        %1248 = vmatpush1.bf16.xpose.msra.mxu0 0
        %1249 = vmatprep.subr.bf16.mxu0 0
        %1250 = vmatpush1.bf16.xpose.msra.mxu0 0
        %1251 = vmatprep.subr.bf16.mxu0 0
        %1252 = vmatpush1.bf16.xpose.msra.mxu0 0
        %1253 = vmatprep.subr.bf16.mxu0 0
        %1254 = vmatpush1.bf16.xpose.msra.mxu0 0
        %1255 = vmatprep.subr.bf16.mxu0 0
        %1256 = vmatpush1.bf16.xpose.msra.mxu0 0
        %1257 = vmatprep.subr.bf16.mxu0 0
        %1258 = vmatpush1.bf16.xpose.msra.mxu0 0
        %1259 = vmatprep.mubr.bf16.mxu0 0
        %1260 = vmatmul.mubr.bf16.gmra.mrb[0].mxu0 %v998
        %v1261 = vpop.f32.mrb[0].mxu0
        %v1262 = vadd.f32 0.0, %v1261
        %v1263 = vpop.f32.mrb[0].mxu0
        %v1264 = vpop.f32.mrb[0].mxu0
        %v1265 = vpop.f32.mrb[0].mxu0
        %1266 = vdwg.mxu0
        %1267 = vmatprep.subr.bf16.mxu0 0
        %1268 = vmatpush1.bf16.xpose.msra.mxu0 %v1219
        %1269 = vmatprep.subr.bf16.mxu0 0
        %1270 = vmatpush1.bf16.xpose.msra.mxu0 %v1220
        %1271 = vmatprep.subr.bf16.mxu0 0
        %1272 = vmatpush1.bf16.xpose.msra.mxu0 %v1221
        %1273 = vmatprep.subr.bf16.mxu0 0
        %1274 = vmatpush1.bf16.xpose.msra.mxu0 %v1222
        %1275 = vmatprep.subr.bf16.mxu0 0
        %1276 = vmatpush1.bf16.xpose.msra.mxu0 %v1223
        %1277 = vmatprep.subr.bf16.mxu0 0
        %1278 = vmatpush1.bf16.xpose.msra.mxu0 %v1224
        %1279 = vmatprep.subr.bf16.mxu0 0
        %1280 = vmatpush1.bf16.xpose.msra.mxu0 %v1225
        %1281 = vmatprep.subr.bf16.mxu0 0
        %1282 = vmatpush1.bf16.xpose.msra.mxu0 %v1226
        %1283 = vmatprep.subr.bf16.mxu0 0
        %1284 = vmatpush1.bf16.xpose.msra.mxu0 0
        %1285 = vmatprep.subr.bf16.mxu0 0
        %1286 = vmatpush1.bf16.xpose.msra.mxu0 0
        %1287 = vmatprep.subr.bf16.mxu0 0
        %1288 = vmatpush1.bf16.xpose.msra.mxu0 0
        %1289 = vmatprep.subr.bf16.mxu0 0
        %1290 = vmatpush1.bf16.xpose.msra.mxu0 0
        %1291 = vmatprep.subr.bf16.mxu0 0
        %1292 = vmatpush1.bf16.xpose.msra.mxu0 0
        %1293 = vmatprep.subr.bf16.mxu0 0
        %1294 = vmatpush1.bf16.xpose.msra.mxu0 0
        %1295 = vmatprep.subr.bf16.mxu0 0
        %1296 = vmatpush1.bf16.xpose.msra.mxu0 0
        %1297 = vmatprep.subr.bf16.mxu0 0
        %1298 = vmatpush1.bf16.xpose.msra.mxu0 0
        %1299 = vmatprep.mubr.bf16.mxu0 0
        %1300 = vmatmul.mubr.bf16.gmra.mrb[0].mxu0 1065369472
        %v1301 = vpop.f32.mrb[0].mxu0
        %v1302 = vadd.f32 0.0, %v1301
        %v1303 = vpop.f32.mrb[0].mxu0
        %v1304 = vpop.f32.mrb[0].mxu0
        %v1305 = vpop.f32.mrb[0].mxu0
        %1306 = vdwg.mxu0
        %v1307 = vrcp.pop %v1302
        %v1308 = vlaneseq
        %v1309 = vshrl.u32 %v1308, 7
        %v1310 = vsub.s32 0, %v1309
        %v1311 = vrot.slane %v1307, %v1310
        %v1312 = vmul.f32 %v1262, %v1311
        %v1313 = vpack.c.bf16 %v471, %v471
        %v1314 = vpack.c.bf16 %v487, %v487
        %v1315 = vpack.c.bf16 %v503, %v503
        %1316 = vxpose.xlu0.c.b16.start [1/8] %v1313, 128
        %1317 = vxpose.xlu0.c.b16.cont [2/8] 0, 128
        %1318 = vxpose.xlu0.c.b16.cont [3/8] 0, 128
        %1319 = vxpose.xlu0.c.b16.cont [4/8] 0, 128
        %1320 = vxpose.xlu0.c.b16.cont [5/8] 0, 128
        %1321 = vxpose.xlu0.c.b16.cont [6/8] 0, 128
        %1322 = vxpose.xlu0.c.b16.cont [7/8] 0, 128
        %1323 = vxpose.xlu0.c.b16.end [8/8] 0, 128
        %v1324 = vpop.trf.xlu0
        %v1325 = vpop.trf.xlu0
        %v1326 = vpop.trf.xlu0
        %v1327 = vpop.trf.xlu0
        %v1328 = vpop.trf.xlu0
        %v1329 = vpop.trf.xlu0
        %v1330 = vpop.trf.xlu0
        %v1331 = vpop.trf.xlu0
        %v1333 = vsel %vm696, %v1324, 0
        %v1336 = vsel %vm696, %v1325, 0
        %v1339 = vsel %vm696, %v1326, 0
        %v1342 = vsel %vm696, %v1327, 0
        %v1345 = vsel %vm696, %v1328, 0
        %v1348 = vsel %vm696, %v1329, 0
        %v1351 = vsel %vm696, %v1330, 0
        %v1354 = vsel %vm696, %v1331, 0
        %v1357 = vsel %vm721, %v1314, 0
        %1359 = vmatprep.subr.bf16.mxu0 0
        %1360 = vmatpush1.bf16.msra.mxu0 %v1357
        %1361 = vmatprep.subr.bf16.mxu0 0
        %1362 = vmatpush1.bf16.msra.mxu0 0
        %1363 = vmatprep.subr.bf16.mxu0 0
        %1364 = vmatpush1.bf16.msra.mxu0 0
        %1365 = vmatprep.subr.bf16.mxu0 0
        %1366 = vmatpush1.bf16.msra.mxu0 0
        %1367 = vmatprep.subr.bf16.mxu0 0
        %1368 = vmatpush1.bf16.msra.mxu0 0
        %1369 = vmatprep.subr.bf16.mxu0 0
        %1370 = vmatpush1.bf16.msra.mxu0 0
        %1371 = vmatprep.subr.bf16.mxu0 0
        %1372 = vmatpush1.bf16.msra.mxu0 0
        %1373 = vmatprep.subr.bf16.mxu0 0
        %1374 = vmatpush1.bf16.msra.mxu0 0
        %1375 = vmatprep.subr.bf16.mxu0 0
        %1376 = vmatpush1.bf16.msra.mxu0 0
        %1377 = vmatprep.subr.bf16.mxu0 0
        %1378 = vmatpush1.bf16.msra.mxu0 0
        %1379 = vmatprep.subr.bf16.mxu0 0
        %1380 = vmatpush1.bf16.msra.mxu0 0
        %1381 = vmatprep.subr.bf16.mxu0 0
        %1382 = vmatpush1.bf16.msra.mxu0 0
        %1383 = vmatprep.subr.bf16.mxu0 0
        %1384 = vmatpush1.bf16.msra.mxu0 0
        %1385 = vmatprep.subr.bf16.mxu0 0
        %1386 = vmatpush1.bf16.msra.mxu0 0
        %1387 = vmatprep.subr.bf16.mxu0 0
        %1388 = vmatpush1.bf16.msra.mxu0 0
        %1389 = vmatprep.subr.bf16.mxu0 0
        %1390 = vmatpush1.bf16.msra.mxu0 0
        %1391 = vmatprep.mubr.bf16.mxu0 0
        %1392 = vmatmul.mubr.bf16.gmra.mrb[0].mxu0 %v1333
        %v1393 = vpop.f32.mrb[0].mxu0
        %v1394 = vadd.f32 %v661, %v1393
        %v1395 = vpop.f32.mrb[0].mxu0
        %v1396 = vpop.f32.mrb[0].mxu0
        %v1397 = vadd.f32 %v662, %v1396
        %v1398 = vpop.f32.mrb[0].mxu0
        %1399 = vmatprep.mubr.bf16.mxu0 0
        %1400 = vmatmul.mubr.bf16.gmra.mrb[0].mxu0 %v1336
        %v1401 = vpop.f32.mrb[0].mxu0
        %v1402 = vadd.f32 %v663, %v1401
        %v1403 = vpop.f32.mrb[0].mxu0
        %v1404 = vpop.f32.mrb[0].mxu0
        %v1405 = vadd.f32 %v664, %v1404
        %v1406 = vpop.f32.mrb[0].mxu0
        %1407 = vmatprep.mubr.bf16.mxu0 0
        %1408 = vmatmul.mubr.bf16.gmra.mrb[0].mxu0 %v1339
        %v1409 = vpop.f32.mrb[0].mxu0
        %v1410 = vadd.f32 %v665, %v1409
        %v1411 = vpop.f32.mrb[0].mxu0
        %v1412 = vpop.f32.mrb[0].mxu0
        %v1413 = vadd.f32 %v666, %v1412
        %v1414 = vpop.f32.mrb[0].mxu0
        %1415 = vmatprep.mubr.bf16.mxu0 0
        %1416 = vmatmul.mubr.bf16.gmra.mrb[0].mxu0 %v1342
        %v1417 = vpop.f32.mrb[0].mxu0
        %v1418 = vadd.f32 %v667, %v1417
        %v1419 = vpop.f32.mrb[0].mxu0
        %v1420 = vpop.f32.mrb[0].mxu0
        %v1421 = vadd.f32 %v668, %v1420
        %v1422 = vpop.f32.mrb[0].mxu0
        %1423 = vmatprep.mubr.bf16.mxu0 0
        %1424 = vmatmul.mubr.bf16.gmra.mrb[0].mxu0 %v1345
        %v1425 = vpop.f32.mrb[0].mxu0
        %v1426 = vadd.f32 %v669, %v1425
        %v1427 = vpop.f32.mrb[0].mxu0
        %v1428 = vpop.f32.mrb[0].mxu0
        %v1429 = vadd.f32 %v670, %v1428
        %v1430 = vpop.f32.mrb[0].mxu0
        %1431 = vmatprep.mubr.bf16.mxu0 0
        %1432 = vmatmul.mubr.bf16.gmra.mrb[0].mxu0 %v1348
        %v1433 = vpop.f32.mrb[0].mxu0
        %v1434 = vadd.f32 %v671, %v1433
        %v1435 = vpop.f32.mrb[0].mxu0
        %v1436 = vpop.f32.mrb[0].mxu0
        %v1437 = vadd.f32 %v672, %v1436
        %v1438 = vpop.f32.mrb[0].mxu0
        %1439 = vmatprep.mubr.bf16.mxu0 0
        %1440 = vmatmul.mubr.bf16.gmra.mrb[0].mxu0 %v1351
        %v1441 = vpop.f32.mrb[0].mxu0
        %v1442 = vadd.f32 %v673, %v1441
        %v1443 = vpop.f32.mrb[0].mxu0
        %v1444 = vpop.f32.mrb[0].mxu0
        %v1445 = vadd.f32 %v674, %v1444
        %v1446 = vpop.f32.mrb[0].mxu0
        %1447 = vmatprep.mubr.bf16.mxu0 0
        %1448 = vmatmul.mubr.bf16.gmra.mrb[0].mxu0 %v1354
        %v1449 = vpop.f32.mrb[0].mxu0
        %v1450 = vadd.f32 %v675, %v1449
        %v1451 = vpop.f32.mrb[0].mxu0
        %v1452 = vpop.f32.mrb[0].mxu0
        %v1453 = vadd.f32 %v676, %v1452
        %v1454 = vpop.f32.mrb[0].mxu0
        %1455 = vdwg.mxu0
        %1456 = vmax.xlane.f32.xlu0 %v1394
        %v1457 = vpop.xlane.xlu0 %1456
        %1458 = vmax.xlane.f32.xlu0 %v1397
        %v1459 = vpop.xlane.xlu0 %1458
        %1460 = vmax.xlane.f32.xlu0 %v1402
        %v1461 = vpop.xlane.xlu0 %1460
        %1462 = vmax.xlane.f32.xlu0 %v1405
        %v1463 = vpop.xlane.xlu0 %1462
        %1464 = vmax.xlane.f32.xlu0 %v1410
        %v1465 = vpop.xlane.xlu0 %1464
        %1466 = vmax.xlane.f32.xlu0 %v1413
        %v1467 = vpop.xlane.xlu0 %1466
        %1468 = vmax.xlane.f32.xlu0 %v1418
        %v1469 = vpop.xlane.xlu0 %1468
        %1470 = vmax.xlane.f32.xlu0 %v1421
        %v1471 = vpop.xlane.xlu0 %1470
        %1472 = vmax.xlane.f32.xlu0 %v1426
        %v1473 = vpop.xlane.xlu0 %1472
        %1474 = vmax.xlane.f32.xlu0 %v1429
        %v1475 = vpop.xlane.xlu0 %1474
        %1476 = vmax.xlane.f32.xlu0 %v1434
        %v1477 = vpop.xlane.xlu0 %1476
        %1478 = vmax.xlane.f32.xlu0 %v1437
        %v1479 = vpop.xlane.xlu0 %1478
        %1480 = vmax.xlane.f32.xlu0 %v1442
        %v1481 = vpop.xlane.xlu0 %1480
        %1482 = vmax.xlane.f32.xlu0 %v1445
        %v1483 = vpop.xlane.xlu0 %1482
        %1484 = vmax.xlane.f32.xlu0 %v1450
        %v1485 = vpop.xlane.xlu0 %1484
        %1486 = vmax.xlane.f32.xlu0 %v1453
        %v1487 = vpop.xlane.xlu0 %1486
        %v1488 = vsub.f32 %v1394, %v1457
        %v1489 = vsub.f32 %v1397, %v1459
        %v1490 = vsub.f32 %v1402, %v1461
        %v1491 = vsub.f32 %v1405, %v1463
        %v1492 = vsub.f32 %v1410, %v1465
        %v1493 = vsub.f32 %v1413, %v1467
        %v1494 = vsub.f32 %v1418, %v1469
        %v1495 = vsub.f32 %v1421, %v1471
        %v1496 = vsub.f32 %v1426, %v1473
        %v1497 = vsub.f32 %v1429, %v1475
        %v1498 = vsub.f32 %v1434, %v1477
        %v1499 = vsub.f32 %v1437, %v1479
        %v1500 = vsub.f32 %v1442, %v1481
        %v1501 = vsub.f32 %v1445, %v1483
        %v1502 = vsub.f32 %v1450, %v1485
        %v1503 = vsub.f32 %v1453, %v1487
        %v1504 = vmul.f32 %v1488, 1.442695
        %v1505 = vpow.pop %v1504
        %v1506 = vmul.f32 %v1489, 1.442695
        %v1507 = vpow.pop %v1506
        %v1508 = vmul.f32 %v1490, 1.442695
        %v1509 = vpow.pop %v1508
        %v1510 = vmul.f32 %v1491, 1.442695
        %v1511 = vpow.pop %v1510
        %v1512 = vmul.f32 %v1492, 1.442695
        %v1513 = vpow.pop %v1512
        %v1514 = vmul.f32 %v1493, 1.442695
        %v1515 = vpow.pop %v1514
        %v1516 = vmul.f32 %v1494, 1.442695
        %v1517 = vpow.pop %v1516
        %v1518 = vmul.f32 %v1495, 1.442695
        %v1519 = vpow.pop %v1518
        %v1520 = vmul.f32 %v1496, 1.442695
        %v1521 = vpow.pop %v1520
        %v1522 = vmul.f32 %v1497, 1.442695
        %v1523 = vpow.pop %v1522
        %v1524 = vmul.f32 %v1498, 1.442695
        %v1525 = vpow.pop %v1524
        %v1526 = vmul.f32 %v1499, 1.442695
        %v1527 = vpow.pop %v1526
        %v1528 = vmul.f32 %v1500, 1.442695
        %v1529 = vpow.pop %v1528
        %v1530 = vmul.f32 %v1501, 1.442695
        %v1531 = vpow.pop %v1530
        %v1532 = vmul.f32 %v1502, 1.442695
        %v1533 = vpow.pop %v1532
        %v1534 = vmul.f32 %v1503, 1.442695
        %v1535 = vpow.pop %v1534
        %v1536 = vpack.c.bf16 %v1507, %v1505
        %v1537 = vpack.c.bf16 %v1511, %v1509
        %v1538 = vpack.c.bf16 %v1515, %v1513
        %v1539 = vpack.c.bf16 %v1519, %v1517
        %v1540 = vpack.c.bf16 %v1523, %v1521
        %v1541 = vpack.c.bf16 %v1527, %v1525
        %v1542 = vpack.c.bf16 %v1531, %v1529
        %v1543 = vpack.c.bf16 %v1535, %v1533
        %1544 = vmatprep.subr.bf16.mxu0 0
        %1545 = vmatpush1.bf16.xpose.msra.mxu0 %v1536
        %1546 = vmatprep.subr.bf16.mxu0 0
        %1547 = vmatpush1.bf16.xpose.msra.mxu0 %v1537
        %1548 = vmatprep.subr.bf16.mxu0 0
        %1549 = vmatpush1.bf16.xpose.msra.mxu0 %v1538
        %1550 = vmatprep.subr.bf16.mxu0 0
        %1551 = vmatpush1.bf16.xpose.msra.mxu0 %v1539
        %1552 = vmatprep.subr.bf16.mxu0 0
        %1553 = vmatpush1.bf16.xpose.msra.mxu0 %v1540
        %1554 = vmatprep.subr.bf16.mxu0 0
        %1555 = vmatpush1.bf16.xpose.msra.mxu0 %v1541
        %1556 = vmatprep.subr.bf16.mxu0 0
        %1557 = vmatpush1.bf16.xpose.msra.mxu0 %v1542
        %1558 = vmatprep.subr.bf16.mxu0 0
        %1559 = vmatpush1.bf16.xpose.msra.mxu0 %v1543
        %1560 = vmatprep.subr.bf16.mxu0 0
        %1561 = vmatpush1.bf16.xpose.msra.mxu0 0
        %1562 = vmatprep.subr.bf16.mxu0 0
        %1563 = vmatpush1.bf16.xpose.msra.mxu0 0
        %1564 = vmatprep.subr.bf16.mxu0 0
        %1565 = vmatpush1.bf16.xpose.msra.mxu0 0
        %1566 = vmatprep.subr.bf16.mxu0 0
        %1567 = vmatpush1.bf16.xpose.msra.mxu0 0
        %1568 = vmatprep.subr.bf16.mxu0 0
        %1569 = vmatpush1.bf16.xpose.msra.mxu0 0
        %1570 = vmatprep.subr.bf16.mxu0 0
        %1571 = vmatpush1.bf16.xpose.msra.mxu0 0
        %1572 = vmatprep.subr.bf16.mxu0 0
        %1573 = vmatpush1.bf16.xpose.msra.mxu0 0
        %1574 = vmatprep.subr.bf16.mxu0 0
        %1575 = vmatpush1.bf16.xpose.msra.mxu0 0
        %1576 = vmatprep.mubr.bf16.mxu0 0
        %1577 = vmatmul.mubr.bf16.gmra.mrb[0].mxu0 %v1315
        %v1578 = vpop.f32.mrb[0].mxu0
        %v1579 = vadd.f32 0.0, %v1578
        %v1580 = vpop.f32.mrb[0].mxu0
        %v1581 = vpop.f32.mrb[0].mxu0
        %v1582 = vpop.f32.mrb[0].mxu0
        %1583 = vdwg.mxu0
        %1584 = vmatprep.subr.bf16.mxu0 0
        %1585 = vmatpush1.bf16.xpose.msra.mxu0 %v1536
        %1586 = vmatprep.subr.bf16.mxu0 0
        %1587 = vmatpush1.bf16.xpose.msra.mxu0 %v1537
        %1588 = vmatprep.subr.bf16.mxu0 0
        %1589 = vmatpush1.bf16.xpose.msra.mxu0 %v1538
        %1590 = vmatprep.subr.bf16.mxu0 0
        %1591 = vmatpush1.bf16.xpose.msra.mxu0 %v1539
        %1592 = vmatprep.subr.bf16.mxu0 0
        %1593 = vmatpush1.bf16.xpose.msra.mxu0 %v1540
        %1594 = vmatprep.subr.bf16.mxu0 0
        %1595 = vmatpush1.bf16.xpose.msra.mxu0 %v1541
        %1596 = vmatprep.subr.bf16.mxu0 0
        %1597 = vmatpush1.bf16.xpose.msra.mxu0 %v1542
        %1598 = vmatprep.subr.bf16.mxu0 0
        %1599 = vmatpush1.bf16.xpose.msra.mxu0 %v1543
        %1600 = vmatprep.subr.bf16.mxu0 0
        %1601 = vmatpush1.bf16.xpose.msra.mxu0 0
        %1602 = vmatprep.subr.bf16.mxu0 0
        %1603 = vmatpush1.bf16.xpose.msra.mxu0 0
        %1604 = vmatprep.subr.bf16.mxu0 0
        %1605 = vmatpush1.bf16.xpose.msra.mxu0 0
        %1606 = vmatprep.subr.bf16.mxu0 0
        %1607 = vmatpush1.bf16.xpose.msra.mxu0 0
        %1608 = vmatprep.subr.bf16.mxu0 0
        %1609 = vmatpush1.bf16.xpose.msra.mxu0 0
        %1610 = vmatprep.subr.bf16.mxu0 0
        %1611 = vmatpush1.bf16.xpose.msra.mxu0 0
        %1612 = vmatprep.subr.bf16.mxu0 0
        %1613 = vmatpush1.bf16.xpose.msra.mxu0 0
        %1614 = vmatprep.subr.bf16.mxu0 0
        %1615 = vmatpush1.bf16.xpose.msra.mxu0 0
        %1616 = vmatprep.mubr.bf16.mxu0 0
        %1617 = vmatmul.mubr.bf16.gmra.mrb[0].mxu0 1065369472
        %v1618 = vpop.f32.mrb[0].mxu0
        %v1619 = vadd.f32 0.0, %v1618
        %v1620 = vpop.f32.mrb[0].mxu0
        %v1621 = vpop.f32.mrb[0].mxu0
        %v1622 = vpop.f32.mrb[0].mxu0
        %1623 = vdwg.mxu0
        %v1624 = vrcp.pop %v1619
        %v1625 = vlaneseq
        %v1626 = vshrl.u32 %v1625, 7
        %v1627 = vsub.s32 0, %v1626
        %v1628 = vrot.slane %v1624, %v1627
        %v1629 = vmul.f32 %v1579, %v1628
        %v1630 = vpack.c.bf16 %v474, %v474
        %v1631 = vpack.c.bf16 %v490, %v490
        %v1632 = vpack.c.bf16 %v506, %v506
        %1633 = vxpose.xlu0.c.b16.start [1/8] %v1630, 128
        %1634 = vxpose.xlu0.c.b16.cont [2/8] 0, 128
        %1635 = vxpose.xlu0.c.b16.cont [3/8] 0, 128
        %1636 = vxpose.xlu0.c.b16.cont [4/8] 0, 128
        %1637 = vxpose.xlu0.c.b16.cont [5/8] 0, 128
        %1638 = vxpose.xlu0.c.b16.cont [6/8] 0, 128
        %1639 = vxpose.xlu0.c.b16.cont [7/8] 0, 128
        %1640 = vxpose.xlu0.c.b16.end [8/8] 0, 128
        %v1641 = vpop.trf.xlu0
        %v1642 = vpop.trf.xlu0
        %v1643 = vpop.trf.xlu0
        %v1644 = vpop.trf.xlu0
        %v1645 = vpop.trf.xlu0
        %v1646 = vpop.trf.xlu0
        %v1647 = vpop.trf.xlu0
        %v1648 = vpop.trf.xlu0
        %v1650 = vsel %vm696, %v1641, 0
        %v1653 = vsel %vm696, %v1642, 0
        %v1656 = vsel %vm696, %v1643, 0
        %v1659 = vsel %vm696, %v1644, 0
        %v1662 = vsel %vm696, %v1645, 0
        %v1665 = vsel %vm696, %v1646, 0
        %v1668 = vsel %vm696, %v1647, 0
        %v1671 = vsel %vm696, %v1648, 0
        %v1674 = vsel %vm721, %v1631, 0
        %1676 = vmatprep.subr.bf16.mxu0 0
        %1677 = vmatpush1.bf16.msra.mxu0 %v1674
        %1678 = vmatprep.subr.bf16.mxu0 0
        %1679 = vmatpush1.bf16.msra.mxu0 0
        %1680 = vmatprep.subr.bf16.mxu0 0
        %1681 = vmatpush1.bf16.msra.mxu0 0
        %1682 = vmatprep.subr.bf16.mxu0 0
        %1683 = vmatpush1.bf16.msra.mxu0 0
        %1684 = vmatprep.subr.bf16.mxu0 0
        %1685 = vmatpush1.bf16.msra.mxu0 0
        %1686 = vmatprep.subr.bf16.mxu0 0
        %1687 = vmatpush1.bf16.msra.mxu0 0
        %1688 = vmatprep.subr.bf16.mxu0 0
        %1689 = vmatpush1.bf16.msra.mxu0 0
        %1690 = vmatprep.subr.bf16.mxu0 0
        %1691 = vmatpush1.bf16.msra.mxu0 0
        %1692 = vmatprep.subr.bf16.mxu0 0
        %1693 = vmatpush1.bf16.msra.mxu0 0
        %1694 = vmatprep.subr.bf16.mxu0 0
        %1695 = vmatpush1.bf16.msra.mxu0 0
        %1696 = vmatprep.subr.bf16.mxu0 0
        %1697 = vmatpush1.bf16.msra.mxu0 0
        %1698 = vmatprep.subr.bf16.mxu0 0
        %1699 = vmatpush1.bf16.msra.mxu0 0
        %1700 = vmatprep.subr.bf16.mxu0 0
        %1701 = vmatpush1.bf16.msra.mxu0 0
        %1702 = vmatprep.subr.bf16.mxu0 0
        %1703 = vmatpush1.bf16.msra.mxu0 0
        %1704 = vmatprep.subr.bf16.mxu0 0
        %1705 = vmatpush1.bf16.msra.mxu0 0
        %1706 = vmatprep.subr.bf16.mxu0 0
        %1707 = vmatpush1.bf16.msra.mxu0 0
        %1708 = vmatprep.mubr.bf16.mxu0 0
        %1709 = vmatmul.mubr.bf16.gmra.mrb[0].mxu0 %v1650
        %v1710 = vpop.f32.mrb[0].mxu0
        %v1711 = vadd.f32 %v661, %v1710
        %v1712 = vpop.f32.mrb[0].mxu0
        %v1713 = vpop.f32.mrb[0].mxu0
        %v1714 = vadd.f32 %v662, %v1713
        %v1715 = vpop.f32.mrb[0].mxu0
        %1716 = vmatprep.mubr.bf16.mxu0 0
        %1717 = vmatmul.mubr.bf16.gmra.mrb[0].mxu0 %v1653
        %v1718 = vpop.f32.mrb[0].mxu0
        %v1719 = vadd.f32 %v663, %v1718
        %v1720 = vpop.f32.mrb[0].mxu0
        %v1721 = vpop.f32.mrb[0].mxu0
        %v1722 = vadd.f32 %v664, %v1721
        %v1723 = vpop.f32.mrb[0].mxu0
        %1724 = vmatprep.mubr.bf16.mxu0 0
        %1725 = vmatmul.mubr.bf16.gmra.mrb[0].mxu0 %v1656
        %v1726 = vpop.f32.mrb[0].mxu0
        %v1727 = vadd.f32 %v665, %v1726
        %v1728 = vpop.f32.mrb[0].mxu0
        %v1729 = vpop.f32.mrb[0].mxu0
        %v1730 = vadd.f32 %v666, %v1729
        %v1731 = vpop.f32.mrb[0].mxu0
        %1732 = vmatprep.mubr.bf16.mxu0 0
        %1733 = vmatmul.mubr.bf16.gmra.mrb[0].mxu0 %v1659
        %v1734 = vpop.f32.mrb[0].mxu0
        %v1735 = vadd.f32 %v667, %v1734
        %v1736 = vpop.f32.mrb[0].mxu0
        %v1737 = vpop.f32.mrb[0].mxu0
        %v1738 = vadd.f32 %v668, %v1737
        %v1739 = vpop.f32.mrb[0].mxu0
        %1740 = vmatprep.mubr.bf16.mxu0 0
        %1741 = vmatmul.mubr.bf16.gmra.mrb[0].mxu0 %v1662
        %v1742 = vpop.f32.mrb[0].mxu0
        %v1743 = vadd.f32 %v669, %v1742
        %v1744 = vpop.f32.mrb[0].mxu0
        %v1745 = vpop.f32.mrb[0].mxu0
        %v1746 = vadd.f32 %v670, %v1745
        %v1747 = vpop.f32.mrb[0].mxu0
        %1748 = vmatprep.mubr.bf16.mxu0 0
        %1749 = vmatmul.mubr.bf16.gmra.mrb[0].mxu0 %v1665
        %v1750 = vpop.f32.mrb[0].mxu0
        %v1751 = vadd.f32 %v671, %v1750
        %v1752 = vpop.f32.mrb[0].mxu0
        %v1753 = vpop.f32.mrb[0].mxu0
        %v1754 = vadd.f32 %v672, %v1753
        %v1755 = vpop.f32.mrb[0].mxu0
        %1756 = vmatprep.mubr.bf16.mxu0 0
        %1757 = vmatmul.mubr.bf16.gmra.mrb[0].mxu0 %v1668
        %v1758 = vpop.f32.mrb[0].mxu0
        %v1759 = vadd.f32 %v673, %v1758
        %v1760 = vpop.f32.mrb[0].mxu0
        %v1761 = vpop.f32.mrb[0].mxu0
        %v1762 = vadd.f32 %v674, %v1761
        %v1763 = vpop.f32.mrb[0].mxu0
        %1764 = vmatprep.mubr.bf16.mxu0 0
        %1765 = vmatmul.mubr.bf16.gmra.mrb[0].mxu0 %v1671
        %v1766 = vpop.f32.mrb[0].mxu0
        %v1767 = vadd.f32 %v675, %v1766
        %v1768 = vpop.f32.mrb[0].mxu0
        %v1769 = vpop.f32.mrb[0].mxu0
        %v1770 = vadd.f32 %v676, %v1769
        %v1771 = vpop.f32.mrb[0].mxu0
        %1772 = vdwg.mxu0
        %1773 = vmax.xlane.f32.xlu0 %v1711
        %v1774 = vpop.xlane.xlu0 %1773
        %1775 = vmax.xlane.f32.xlu0 %v1714
        %v1776 = vpop.xlane.xlu0 %1775
        %1777 = vmax.xlane.f32.xlu0 %v1719
        %v1778 = vpop.xlane.xlu0 %1777
        %1779 = vmax.xlane.f32.xlu0 %v1722
        %v1780 = vpop.xlane.xlu0 %1779
        %1781 = vmax.xlane.f32.xlu0 %v1727
        %v1782 = vpop.xlane.xlu0 %1781
        %1783 = vmax.xlane.f32.xlu0 %v1730
        %v1784 = vpop.xlane.xlu0 %1783
        %1785 = vmax.xlane.f32.xlu0 %v1735
        %v1786 = vpop.xlane.xlu0 %1785
        %1787 = vmax.xlane.f32.xlu0 %v1738
        %v1788 = vpop.xlane.xlu0 %1787
        %1789 = vmax.xlane.f32.xlu0 %v1743
        %v1790 = vpop.xlane.xlu0 %1789
        %1791 = vmax.xlane.f32.xlu0 %v1746
        %v1792 = vpop.xlane.xlu0 %1791
        %1793 = vmax.xlane.f32.xlu0 %v1751
        %v1794 = vpop.xlane.xlu0 %1793
        %1795 = vmax.xlane.f32.xlu0 %v1754
        %v1796 = vpop.xlane.xlu0 %1795
        %1797 = vmax.xlane.f32.xlu0 %v1759
        %v1798 = vpop.xlane.xlu0 %1797
        %1799 = vmax.xlane.f32.xlu0 %v1762
        %v1800 = vpop.xlane.xlu0 %1799
        %1801 = vmax.xlane.f32.xlu0 %v1767
        %v1802 = vpop.xlane.xlu0 %1801
        %1803 = vmax.xlane.f32.xlu0 %v1770
        %v1804 = vpop.xlane.xlu0 %1803
        %v1805 = vsub.f32 %v1711, %v1774
        %v1806 = vsub.f32 %v1714, %v1776
        %v1807 = vsub.f32 %v1719, %v1778
        %v1808 = vsub.f32 %v1722, %v1780
        %v1809 = vsub.f32 %v1727, %v1782
        %v1810 = vsub.f32 %v1730, %v1784
        %v1811 = vsub.f32 %v1735, %v1786
        %v1812 = vsub.f32 %v1738, %v1788
        %v1813 = vsub.f32 %v1743, %v1790
        %v1814 = vsub.f32 %v1746, %v1792
        %v1815 = vsub.f32 %v1751, %v1794
        %v1816 = vsub.f32 %v1754, %v1796
        %v1817 = vsub.f32 %v1759, %v1798
        %v1818 = vsub.f32 %v1762, %v1800
        %v1819 = vsub.f32 %v1767, %v1802
        %v1820 = vsub.f32 %v1770, %v1804
        %v1821 = vmul.f32 %v1805, 1.442695
        %v1822 = vpow.pop %v1821
        %v1823 = vmul.f32 %v1806, 1.442695
        %v1824 = vpow.pop %v1823
        %v1825 = vmul.f32 %v1807, 1.442695
        %v1826 = vpow.pop %v1825
        %v1827 = vmul.f32 %v1808, 1.442695
        %v1828 = vpow.pop %v1827
        %v1829 = vmul.f32 %v1809, 1.442695
        %v1830 = vpow.pop %v1829
        %v1831 = vmul.f32 %v1810, 1.442695
        %v1832 = vpow.pop %v1831
        %v1833 = vmul.f32 %v1811, 1.442695
        %v1834 = vpow.pop %v1833
        %v1835 = vmul.f32 %v1812, 1.442695
        %v1836 = vpow.pop %v1835
        %v1837 = vmul.f32 %v1813, 1.442695
        %v1838 = vpow.pop %v1837
        %v1839 = vmul.f32 %v1814, 1.442695
        %v1840 = vpow.pop %v1839
        %v1841 = vmul.f32 %v1815, 1.442695
        %v1842 = vpow.pop %v1841
        %v1843 = vmul.f32 %v1816, 1.442695
        %v1844 = vpow.pop %v1843
        %v1845 = vmul.f32 %v1817, 1.442695
        %v1846 = vpow.pop %v1845
        %v1847 = vmul.f32 %v1818, 1.442695
        %v1848 = vpow.pop %v1847
        %v1849 = vmul.f32 %v1819, 1.442695
        %v1850 = vpow.pop %v1849
        %v1851 = vmul.f32 %v1820, 1.442695
        %v1852 = vpow.pop %v1851
        %v1853 = vpack.c.bf16 %v1824, %v1822
        %v1854 = vpack.c.bf16 %v1828, %v1826
        %v1855 = vpack.c.bf16 %v1832, %v1830
        %v1856 = vpack.c.bf16 %v1836, %v1834
        %v1857 = vpack.c.bf16 %v1840, %v1838
        %v1858 = vpack.c.bf16 %v1844, %v1842
        %v1859 = vpack.c.bf16 %v1848, %v1846
        %v1860 = vpack.c.bf16 %v1852, %v1850
        %1861 = vmatprep.subr.bf16.mxu0 0
        %1862 = vmatpush1.bf16.xpose.msra.mxu0 %v1853
        %1863 = vmatprep.subr.bf16.mxu0 0
        %1864 = vmatpush1.bf16.xpose.msra.mxu0 %v1854
        %1865 = vmatprep.subr.bf16.mxu0 0
        %1866 = vmatpush1.bf16.xpose.msra.mxu0 %v1855
        %1867 = vmatprep.subr.bf16.mxu0 0
        %1868 = vmatpush1.bf16.xpose.msra.mxu0 %v1856
        %1869 = vmatprep.subr.bf16.mxu0 0
        %1870 = vmatpush1.bf16.xpose.msra.mxu0 %v1857
        %1871 = vmatprep.subr.bf16.mxu0 0
        %1872 = vmatpush1.bf16.xpose.msra.mxu0 %v1858
        %1873 = vmatprep.subr.bf16.mxu0 0
        %1874 = vmatpush1.bf16.xpose.msra.mxu0 %v1859
        %1875 = vmatprep.subr.bf16.mxu0 0
        %1876 = vmatpush1.bf16.xpose.msra.mxu0 %v1860
        %1877 = vmatprep.subr.bf16.mxu0 0
        %1878 = vmatpush1.bf16.xpose.msra.mxu0 0
        %1879 = vmatprep.subr.bf16.mxu0 0
        %1880 = vmatpush1.bf16.xpose.msra.mxu0 0
        %1881 = vmatprep.subr.bf16.mxu0 0
        %1882 = vmatpush1.bf16.xpose.msra.mxu0 0
        %1883 = vmatprep.subr.bf16.mxu0 0
        %1884 = vmatpush1.bf16.xpose.msra.mxu0 0
        %1885 = vmatprep.subr.bf16.mxu0 0
        %1886 = vmatpush1.bf16.xpose.msra.mxu0 0
        %1887 = vmatprep.subr.bf16.mxu0 0
        %1888 = vmatpush1.bf16.xpose.msra.mxu0 0
        %1889 = vmatprep.subr.bf16.mxu0 0
        %1890 = vmatpush1.bf16.xpose.msra.mxu0 0
        %1891 = vmatprep.subr.bf16.mxu0 0
        %1892 = vmatpush1.bf16.xpose.msra.mxu0 0
        %1893 = vmatprep.mubr.bf16.mxu0 0
        %1894 = vmatmul.mubr.bf16.gmra.mrb[0].mxu0 %v1632
        %v1895 = vpop.f32.mrb[0].mxu0
        %v1896 = vadd.f32 0.0, %v1895
        %v1897 = vpop.f32.mrb[0].mxu0
        %v1898 = vpop.f32.mrb[0].mxu0
        %v1899 = vpop.f32.mrb[0].mxu0
        %1900 = vdwg.mxu0
        %1901 = vmatprep.subr.bf16.mxu0 0
        %1902 = vmatpush1.bf16.xpose.msra.mxu0 %v1853
        %1903 = vmatprep.subr.bf16.mxu0 0
        %1904 = vmatpush1.bf16.xpose.msra.mxu0 %v1854
        %1905 = vmatprep.subr.bf16.mxu0 0
        %1906 = vmatpush1.bf16.xpose.msra.mxu0 %v1855
        %1907 = vmatprep.subr.bf16.mxu0 0
        %1908 = vmatpush1.bf16.xpose.msra.mxu0 %v1856
        %1909 = vmatprep.subr.bf16.mxu0 0
        %1910 = vmatpush1.bf16.xpose.msra.mxu0 %v1857
        %1911 = vmatprep.subr.bf16.mxu0 0
        %1912 = vmatpush1.bf16.xpose.msra.mxu0 %v1858
        %1913 = vmatprep.subr.bf16.mxu0 0
        %1914 = vmatpush1.bf16.xpose.msra.mxu0 %v1859
        %1915 = vmatprep.subr.bf16.mxu0 0
        %1916 = vmatpush1.bf16.xpose.msra.mxu0 %v1860
        %1917 = vmatprep.subr.bf16.mxu0 0
        %1918 = vmatpush1.bf16.xpose.msra.mxu0 0
        %1919 = vmatprep.subr.bf16.mxu0 0
        %1920 = vmatpush1.bf16.xpose.msra.mxu0 0
        %1921 = vmatprep.subr.bf16.mxu0 0
        %1922 = vmatpush1.bf16.xpose.msra.mxu0 0
        %1923 = vmatprep.subr.bf16.mxu0 0
        %1924 = vmatpush1.bf16.xpose.msra.mxu0 0
        %1925 = vmatprep.subr.bf16.mxu0 0
        %1926 = vmatpush1.bf16.xpose.msra.mxu0 0
        %1927 = vmatprep.subr.bf16.mxu0 0
        %1928 = vmatpush1.bf16.xpose.msra.mxu0 0
        %1929 = vmatprep.subr.bf16.mxu0 0
        %1930 = vmatpush1.bf16.xpose.msra.mxu0 0
        %1931 = vmatprep.subr.bf16.mxu0 0
        %1932 = vmatpush1.bf16.xpose.msra.mxu0 0
        %1933 = vmatprep.mubr.bf16.mxu0 0
        %1934 = vmatmul.mubr.bf16.gmra.mrb[0].mxu0 1065369472
        %v1935 = vpop.f32.mrb[0].mxu0
        %v1936 = vadd.f32 0.0, %v1935
        %v1937 = vpop.f32.mrb[0].mxu0
        %v1938 = vpop.f32.mrb[0].mxu0
        %v1939 = vpop.f32.mrb[0].mxu0
        %1940 = vdwg.mxu0
        %v1941 = vrcp.pop %v1936
        %v1942 = vlaneseq
        %v1943 = vshrl.u32 %v1942, 7
        %v1944 = vsub.s32 0, %v1943
        %v1945 = vrot.slane %v1941, %v1944
        %v1946 = vmul.f32 %v1896, %v1945
        %v1947 = vadd.f32 %v995, %v606
        %v1948 = vadd.f32 %v1312, %v607
        %v1949 = vadd.f32 %v1629, %v608
        %v1950 = vadd.f32 %v1946, %v609
        %v1951 = vld [vmem:[%s6] sm:$0x3]
        %v1952 = vpack.c.bf16 %v1948, %v1947
        %v1953 = vpack.c.bf16 %v1950, %v1949
        %1954 = vset.pattern.permute.xlu0 2
        %1955 = vperm.xlu0 %1954, %v276
        %v1956 = vpop.permute.xlu0 %1955
        %vm1958 = vcmask 261120
        %v1960 = vsel %vm1958, %v1951, 0
        %1962 = vmatprep.subr.bf16.mxu0 0
        %1963 = vmatpush1.bf16.msra.mxu0 %v1952
        %1964 = vmatprep.subr.bf16.mxu0 0
        %1965 = vmatpush1.bf16.msra.mxu0 %v1953
        %1966 = vmatprep.subr.bf16.mxu0 0
        %1967 = vmatpush1.bf16.msra.mxu0 0
        %1968 = vmatprep.subr.bf16.mxu0 0
        %1969 = vmatpush1.bf16.msra.mxu0 0
        %1970 = vmatprep.subr.bf16.mxu0 0
        %1971 = vmatpush1.bf16.msra.mxu0 0
        %1972 = vmatprep.subr.bf16.mxu0 0
        %1973 = vmatpush1.bf16.msra.mxu0 0
        %1974 = vmatprep.subr.bf16.mxu0 0
        %1975 = vmatpush1.bf16.msra.mxu0 0
        %1976 = vmatprep.subr.bf16.mxu0 0
        %1977 = vmatpush1.bf16.msra.mxu0 0
        %1978 = vmatprep.subr.bf16.mxu0 0
        %1979 = vmatpush1.bf16.msra.mxu0 0
        %1980 = vmatprep.subr.bf16.mxu0 0
        %1981 = vmatpush1.bf16.msra.mxu0 0
        %1982 = vmatprep.subr.bf16.mxu0 0
        %1983 = vmatpush1.bf16.msra.mxu0 0
        %1984 = vmatprep.subr.bf16.mxu0 0
        %1985 = vmatpush1.bf16.msra.mxu0 0
        %1986 = vmatprep.subr.bf16.mxu0 0
        %1987 = vmatpush1.bf16.msra.mxu0 0
        %1988 = vmatprep.subr.bf16.mxu0 0
        %1989 = vmatpush1.bf16.msra.mxu0 0
        %1990 = vmatprep.subr.bf16.mxu0 0
        %1991 = vmatpush1.bf16.msra.mxu0 0
        %1992 = vmatprep.subr.bf16.mxu0 0
        %1993 = vmatpush1.bf16.msra.mxu0 0
        %1994 = vmatprep.mubr.bf16.mxu0 0
        %1995 = vmatmul.mubr.bf16.gmra.mrb[0].mxu0 %v1960
        %v1996 = vpop.f32.mrb[0].mxu0
        %v1997 = vadd.f32 %v1956, %v1996
        %v1998 = vpop.f32.mrb[0].mxu0
        %v1999 = vpop.f32.mrb[0].mxu0
        %v2000 = vpop.f32.mrb[0].mxu0
        %2001 = vdwg.mxu0
        %v2002 = vmul.f32 %v1997, 0.5
        %v2003 = vmul.f32 %v1997, 0.70710677
        %v2004 = verf.f32.pop %v2003
        %v2005 = vadd.f32 %v2004, 1.0
        %v2006 = vmul.f32 %v2002, %v2005
        %2007 = vst [vmem:[%s269] sm:$0xf] %v2006
        %s2008 = sand.u32 %s181, 1
        %s2009 = scalar_lea.sflag [#allocation3], %s2008
        %s2010 = sand.u32 %s181, 1
        %s2011 = smul.addr %s2010, 4
        %s2012 = scalar_lea.vmem [#allocation2], %s2011
        // Predicated region
        $region49: #{tpu_custom_call.1} parent=47 // pred_check
          %p2013 = pneg %p191
        $region50: #{tpu_custom_call.1} parent=47 // pred_check_branch
          %2015 = sbr.rel (%p2013) target = $region52
        $region51: #{tpu_custom_call.1} parent=47 // pred_region
          %s2017 = ssub.s32 64, 64
          %2018 = vsyncadd %s2009, %s2017
          %s2019 = smul.addr %s21, 64
          %s2020 = scalar_lea.hbm %s7, %s2019
          %s2022 = sshll.u32 %s2012, 4
          %s2023 = int_to_ptr.vmem [resolvable:$true] %s2022
          %2025 = dma.vmem_to_hbm [thread:$0]  %s2023, 64, %s2020, %s2009
        $region52: #{tpu_custom_call.1} parent=47 // pred_fallthru
          _
      $region48: #{tpu_custom_call.1} parent=5 // pred_fallthru
        _
      %p2026 = scmp.le.s32.totalorder 2, %s16
      // Predicated region
      $region53: #{tpu_custom_call.1} parent=5 // pred_check
        %p2027 = pneg %p2026
      $region54: #{tpu_custom_call.1} parent=5 // pred_check_branch
        %2029 = sbr.rel (%p2027) target = $region56
      $region55: #{tpu_custom_call.1} parent=5 // pred_region
        %s2030 = ssub.s32 %s16, 2
        // Predicated region
        $region57: #{tpu_custom_call.1} parent=55 // pred_check
          %p2031 = pneg %p197
        $region58: #{tpu_custom_call.1} parent=55 // pred_check_branch
          %2033 = sbr.rel (%p2031) target = $region60
        $region59: #{tpu_custom_call.1} parent=55 // pred_region
          %s2034 = sand.u32 %s182, 1
          %s2035 = scalar_lea.sflag [#allocation3], %s2034
          %s2036 = sand.u32 %s182, 1
          %s2037 = smul.addr %s2036, 4
          %s2038 = scalar_lea.vmem [#allocation2], %s2037
          %2039 = dma.done %s2035, 64
        $region60: #{tpu_custom_call.1} parent=55 // pred_fallthru
          _
      $region56: #{tpu_custom_call.1} parent=5 // pred_fallthru
        _
    $region6: #{tpu_custom_call.1} parent=1 // loop_footer
      %s20 = sadd.s32 1, %s16
    $region7: #{tpu_custom_call.1} parent=1 // loop_footer_branch
      %15 = sbr.rel target = $region3
    $region8: #{tpu_custom_call.1} parent=1 // loop_exit
      _
    %2040 = vsyncpa [#allocation3], 1
    %s2041 = scalar_lea.sflag [#allocation3], 1
    %2042 = vsyncpa %s2041, 1

</llo_original>
